<compile_context>
chip_gen: v7x
topology: tpu7x:2x2x1
jax: 0.10.0
libtpu: 0.0.40
codegen_flags: <defaults>
</compile_context>

<pallas_src>
import functools

import jax
import jax.numpy as jnp
from jax import lax
from jax.experimental import pallas as pl
from jax.experimental.pallas import tpu as pltpu


COMPUTE_DTYPE = jnp.bfloat16   # MXU operand dtype (accumulation stays f32)


# ----------------------------------------------------------------------------
# Layer-0 input projection: x_proj[d] = x @ W_ih[d]^T + (b_ih[d] + b_hh[d])
# One big (T*B, E) @ (E, 4H) matmul per direction; grid=(2,) over directions.
# ----------------------------------------------------------------------------
def _proj_input_kernel(x_ref, w_ref, b_ref, out_ref):
    T, Bp, E = x_ref.shape
    G = w_ref.shape[-1]
    x2 = x_ref[...].reshape(T * Bp, E).astype(w_ref.dtype)      # bf16 operands
    acc = jnp.dot(x2, w_ref[...], preferred_element_type=jnp.float32)
    out_ref[...] = (acc + b_ref[...]).reshape(T, Bp, G)


def proj_input(x, w_ih_t, bias):
    """x: (T, Bp, E) f32, w_ih_t: (2, E, 4H) bf16, bias: (2, 1, 4H) f32
    -> (2, T, Bp, 4H) f32 (bias already folded in)."""
    T, Bp, E = x.shape
    G = w_ih_t.shape[-1]
    return pl.pallas_call(
        _proj_input_kernel,
        out_shape=jax.ShapeDtypeStruct((2, T, Bp, G), jnp.float32),
        grid=(2,),
        in_specs=[
            pl.BlockSpec((T, Bp, E), lambda d: (0, 0, 0)),       # same block both dirs
            pl.BlockSpec((None, E, G), lambda d: (d, 0, 0)),
            pl.BlockSpec((None, 1, G), lambda d: (d, 0, 0)),
        ],
        out_specs=pl.BlockSpec((None, T, Bp, G), lambda d: (d, 0, 0, 0)),
        compiler_params=pltpu.CompilerParams(
            dimension_semantics=("parallel",)),
    )(x, w_ih_t, bias)


# ----------------------------------------------------------------------------
# Layer>=1 input projection: consumes the previous layer's direction-split output
# (2, T, B, H) directly (no concat): x_proj[d] = h_fwd @ W[d,:H] + h_bwd @ W[d,H:] + b[d]
# ----------------------------------------------------------------------------
def _proj_hidden_kernel(h_ref, w_ref, b_ref, out_ref):
    _, T, Bp, H = h_ref.shape
    G = w_ref.shape[-1]
    w = w_ref[...]                                               # (2H, 4H) bf16
    h0 = h_ref[0].reshape(T * Bp, H).astype(w.dtype)             # prev fwd half
    h1 = h_ref[1].reshape(T * Bp, H).astype(w.dtype)             # prev bwd half
    acc = jnp.dot(h0, w[:H, :], preferred_element_type=jnp.float32)
    acc = acc + jnp.dot(h1, w[H:, :], preferred_element_type=jnp.float32)
    out_ref[...] = (acc + b_ref[...]).reshape(T, Bp, G)


def proj_hidden(h_prev, w_ih_t, bias):
    """h_prev: (2, T, Bp, H) f32, w_ih_t: (2, 2H, 4H) bf16, bias: (2, 1, 4H) f32
    -> (2, T, Bp, 4H) f32."""
    _, T, Bp, H = h_prev.shape
    G = w_ih_t.shape[-1]
    return pl.pallas_call(
        _proj_hidden_kernel,
        out_shape=jax.ShapeDtypeStruct((2, T, Bp, G), jnp.float32),
        grid=(2,),
        in_specs=[
            pl.BlockSpec((2, T, Bp, H), lambda d: (0, 0, 0, 0)),
            pl.BlockSpec((None, 2 * H, G), lambda d: (d, 0, 0)),
            pl.BlockSpec((None, 1, G), lambda d: (d, 0, 0)),
        ],
        out_specs=pl.BlockSpec((None, T, Bp, G), lambda d: (d, 0, 0, 0)),
        compiler_params=pltpu.CompilerParams(
            dimension_semantics=("parallel",)),
    )(h_prev, w_ih_t, bias)


# ----------------------------------------------------------------------------
# Bidirectional recurrence: grid=(2,) over directions ("parallel" -> v7x dual-TC).
# One grid step runs the full time loop (lax.fori_loop) for its direction, writing
# the (T, Bp, H) output slab in VMEM; the backward direction is just reversed
# indexing (t = T-1-i), matching PyTorch's bidirectional output layout.
# ----------------------------------------------------------------------------
def _bilstm_recurrence_kernel(xproj_ref, whh_ref, h_out_ref):
    d = pl.program_id(0)                       # 0 = forward, 1 = backward
    T, Bp, G = xproj_ref.shape
    H = whh_ref.shape[0]
    whh = whh_ref[...]                         # (H, 4H) bf16, resident in VMEM

    def step(i, carry):
        h, c = carry                           # f32 (Bp, H)
        t = jnp.where(d == 0, i, T - 1 - i)    # reversed time for backward direction
        gates = xproj_ref[t] + jnp.dot(h.astype(whh.dtype), whh,
                                       preferred_element_type=jnp.float32)
        # PyTorch gate order: i, f, g, o (bias already folded into xproj)
        i_g = jax.nn.sigmoid(gates[:, 0 * H:1 * H])
        f_g = jax.nn.sigmoid(gates[:, 1 * H:2 * H])
        g_g = jnp.tanh(gates[:, 2 * H:3 * H])
        o_g = jax.nn.sigmoid(gates[:, 3 * H:4 * H])
        c_new = f_g * c + i_g * g_g
        h_new = o_g * jnp.tanh(c_new)
        h_out_ref[t] = h_new                   # store at ORIGINAL time index
        return h_new, c_new

    h0 = jnp.zeros((Bp, H), jnp.float32)
    c0 = jnp.zeros((Bp, H), jnp.float32)
    lax.fori_loop(0, T, step, (h0, c0), unroll=True if T <= 16 else False)


def bilstm_recurrence(x_proj, w_hh_t):
    """x_proj: (2, T, Bp, 4H) f32, w_hh_t: (2, H, 4H) bf16 -> (2, T, Bp, H) f32."""
    _, T, Bp, G = x_proj.shape
    H = w_hh_t.shape[1]
    # TODO(synk): for very long T, chunk the time axis (e.g. 128 steps / grid iter)
    # so the per-chunk x_proj/h slabs stay well under the v7x 64 MiB VMEM budget.
    return pl.pallas_call(
        _bilstm_recurrence_kernel,
        out_shape=jax.ShapeDtypeStruct((2, T, Bp, H), jnp.float32),
        grid=(2,),
        in_specs=[
            pl.BlockSpec((None, T, Bp, G), lambda d: (d, 0, 0, 0)),
            pl.BlockSpec((None, H, G), lambda d: (d, 0, 0)),
        ],
        out_specs=pl.BlockSpec((None, T, Bp, H), lambda d: (d, 0, 0, 0)),
        compiler_params=pltpu.CompilerParams(
            dimension_semantics=("parallel",)),   # directions are independent
    )(x_proj, w_hh_t)


# ----------------------------------------------------------------------------
# Classifier head: sigmoid(h_fwd[T-1] . w[:H] + h_bwd[T-1] . w[H:] + b)
# No MXU N=1 dot: VPU multiply + lane reduce.  Only the last-time slab is DMA'd in.
# ----------------------------------------------------------------------------
def _head_kernel(hlast_ref, w_ref, b_ref, o_ref):
    z0 = jnp.sum(hlast_ref[0] * w_ref[0], axis=-1, keepdims=True)   # (Bp, 1)
    z1 = jnp.sum(hlast_ref[1] * w_ref[1], axis=-1, keepdims=True)
    o_ref[...] = jax.nn.sigmoid(z0 + z1 + b_ref[...])


def head(h_all, fc_w, fc_b):
    """h_all: (2, T, Bp, H) f32, fc_w: (2, 1, H) f32, fc_b: (1, 1) f32 -> (Bp, 1)."""
    _, T, Bp, H = h_all.shape
    return pl.pallas_call(
        _head_kernel,
        out_shape=jax.ShapeDtypeStruct((Bp, 1), jnp.float32),
        grid=(1,),
        in_specs=[
            pl.BlockSpec((2, None, Bp, H), lambda i: (0, T - 1, 0, 0)),  # last step only
            pl.BlockSpec((2, 1, H), lambda i: (0, 0, 0)),
            pl.BlockSpec((1, 1), lambda i: (0, 0)),
        ],
        out_specs=pl.BlockSpec((Bp, 1), lambda i: (0, 0)),
    )(h_all, fc_w, fc_b)


# ----------------------------------------------------------------------------
# Parameter construction (deterministic, PyTorch-shaped, pre-transformed layout).
# ----------------------------------------------------------------------------
def init_params(key, vocab_size, embedding_dim, hidden_dim, num_layers,
                compute_dtype=COMPUTE_DTYPE):
    H = hidden_dim
    params = {}
    k_emb, k_lstm, k_fc = jax.random.split(key, 3)

    # nn.Embedding(vocab_size, embedding_dim, padding_idx=0)
    emb = jax.random.normal(k_emb, (vocab_size, embedding_dim), jnp.float32)
    emb = emb.at[0].set(0.0)                       # padding_idx=0 -> zero row
    params["embedding"] = emb

    # nn.LSTM(embedding_dim, hidden_dim, num_layers, bidirectional=True)
    scale = 1.0 / jnp.sqrt(jnp.float32(H))
    keys = jax.random.split(k_lstm, num_layers * 2 * 4)
    ki = 0
    layers = []
    for layer in range(num_layers):
        in_dim = embedding_dim if layer == 0 else 2 * H
        w_ih_t, w_hh_t, bias = [], [], []
        for _direction in range(2):               # 0 = forward, 1 = backward
            w_ih = jax.random.uniform(keys[ki + 0], (4 * H, in_dim),
                                      jnp.float32, -scale, scale)
            w_hh = jax.random.uniform(keys[ki + 1], (4 * H, H),
                                      jnp.float32, -scale, scale)
            b_ih = jax.random.uniform(keys[ki + 2], (4 * H,),
                                      jnp.float32, -scale, scale)
            b_hh = jax.random.uniform(keys[ki + 3], (4 * H,),
                                      jnp.float32, -scale, scale)
            ki += 4
            w_ih_t.append(w_ih.T)                              # (in_dim, 4H)
            w_hh_t.append(w_hh.T)                              # (H, 4H)
            bias.append((b_ih + b_hh).reshape(1, 4 * H))       # pre-summed bias
        layers.append({
            # Weights stored bf16 (MXU operands); biases f32 (folded into f32 x_proj).
            # TODO(synk): for large hidden sizes on v7x, single-buffer these constant
            # weight blocks (pipeline_mode=pl.Buffered(1)) to halve resident VMEM.
            "w_ih_t": jnp.stack(w_ih_t).astype(compute_dtype),   # (2, in_dim, 4H)
            "w_hh_t": jnp.stack(w_hh_t).astype(compute_dtype),   # (2, H, 4H)
            "bias":   jnp.stack(bias).astype(jnp.float32),       # (2, 1, 4H)
        })
    params["lstm"] = layers

    # nn.Linear(hidden_dim * 2, 1) — split into forward/backward halves (no concat).
    fc_scale = 1.0 / jnp.sqrt(jnp.float32(2 * H))
    k_fw, k_fb = jax.random.split(k_fc)
    fc_w = jax.random.uniform(k_fw, (1, 2 * H), jnp.float32, -fc_scale, fc_scale)
    fc_b = jax.random.uniform(k_fb, (1,), jnp.float32, -fc_scale, fc_scale)
    params["fc_w"] = jnp.stack([fc_w[:, :H], fc_w[:, H:]], axis=0)   # (2, 1, H)
    params["fc_b"] = fc_b.reshape(1, 1)                              # (1, 1)
    return params


# ----------------------------------------------------------------------------
# Full forward pass (eval-mode semantics).
# ----------------------------------------------------------------------------
@functools.partial(jax.jit, static_argnames=())
def lstm_classifier_forward(tokens, params):
    B, T = tokens.shape
    # Embedding lookup (glue, plain JAX gather), then time-major layout.
    emb = jnp.take(params["embedding"], tokens, axis=0)       # (B, T, E)
    x = jnp.transpose(emb, (1, 0, 2)).astype(jnp.float32)     # (T, B, E)

    # Pad batch to a full f32 sublane tile (8); extra rows are sliced off at the end.
    B_pad = max(8, ((B + 7) // 8) * 8)
    if B_pad != B:
        x = jnp.pad(x, ((0, 0), (0, B_pad - B), (0, 0)))

    layers = params["lstm"]
    l0 = layers[0]
    x_proj = proj_input(x, l0["w_ih_t"], l0["bias"])          # (2, T, Bp, 4H)
    h = bilstm_recurrence(x_proj, l0["w_hh_t"])               # (2, T, Bp, H)
    for lp in layers[1:]:
        # TODO(synk): nn.LSTM inter-layer dropout is identity in eval mode; training-mode
        # dropout is not implemented here.
        x_proj = proj_hidden(h, lp["w_ih_t"], lp["bias"])
        h = bilstm_recurrence(x_proj, lp["w_hh_t"])

    # lstm_out[:, -1, :] == [h_fwd(T-1), h_bwd at original time T-1]; self.dropout is
    # identity in eval mode; FC + sigmoid fused in the head kernel.
    out = head(h, params["fc_w"], params["fc_b"])             # (Bp, 1)
    return out[:B]


if __name__ == "__main__":
    # Small shapes consistent with the module's forward.
    VOCAB = 50
    EMBED = 32
    HIDDEN = 32
    NUM_LAYERS = 2
    B, T = 2, 8

    key = jax.random.PRNGKey(0)
    k_params, k_tokens = jax.random.split(key)

    params = init_params(k_params, VOCAB, EMBED, HIDDEN, NUM_LAYERS)
    tokens = jax.random.randint(k_tokens, (B, T), 0, VOCAB, dtype=jnp.int32)

    out = lstm_classifier_forward(tokens, params)
    out = jax.block_until_ready(out)
    assert out.shape == (B, 1)
    assert bool(jnp.all((out >= 0.0) & (out <= 1.0)))
    print("KERNEL_OK")
</pallas_src>

<mosaic_0001>
module attributes {stable_mosaic.version = 11 : i64} {
  func.func @_proj_input_kernel(%arg0: i32, %arg1: memref<8x8x32xf32, #tpu.memory_space<vmem>>, %arg2: memref<1x32x128xbf16, #tpu.memory_space<vmem>>, %arg3: memref<1x1x128xf32, #tpu.memory_space<vmem>>, %arg4: memref<1x8x8x128xf32, #tpu.memory_space<vmem>>) attributes {dimension_semantics = [#tpu.dimension_semantics<parallel>], iteration_bounds = array<i64: 2>, scalar_prefetch = 0 : i64, scratch_operands = 0 : i64, tpu.core_type = #tpu.core_type<tc>, window_params = [{pipeline_mode = #tpu.pipeline_mode<synchronous>, transform_indices = @transform_0, window_bounds = array<i64: 8, 8, 32>}, {transform_indices = @transform_1, window_bounds = array<i64: 1, 32, 128>}, {transform_indices = @transform_2, window_bounds = array<i64: 1, 1, 128>}, {transform_indices = @transform_3, window_bounds = array<i64: 1, 8, 8, 128>}]} {
    %c0 = arith.constant 0 : index
    %c0_0 = arith.constant 0 : index
    %c0_1 = arith.constant 0 : index
    %0 = vector.load %arg1[%c0, %c0_0, %c0_1] : memref<8x8x32xf32, #tpu.memory_space<vmem>>, vector<8x8x32xf32>
    %1 = vector.shape_cast %0 : vector<8x8x32xf32> to vector<64x32xf32>
    %2 = arith.truncf %1 : vector<64x32xf32> to vector<64x32xbf16>
    %c0_2 = arith.constant 0 : index
    %c0_3 = arith.constant 0 : index
    %c0_4 = arith.constant 0 : index
    %3 = vector.load %arg2[%c0_2, %c0_3, %c0_4] : memref<1x32x128xbf16, #tpu.memory_space<vmem>>, vector<1x32x128xbf16>
    %4 = vector.shape_cast %3 : vector<1x32x128xbf16> to vector<32x128xbf16>
    %cst = arith.constant dense<0.000000e+00> : vector<64x128xf32>
    %5 = tpu.matmul %2, %4, %cst {dimension_numbers = #tpu.dot_dimension_numbers<[1], [0], [0], [1], [0, 0, 1, 1], [], []>} : vector<64x32xbf16>, vector<32x128xbf16>, vector<64x128xf32> -> vector<64x128xf32>
    %c0_5 = arith.constant 0 : index
    %c0_6 = arith.constant 0 : index
    %c0_7 = arith.constant 0 : index
    %6 = vector.load %arg3[%c0_5, %c0_6, %c0_7] : memref<1x1x128xf32, #tpu.memory_space<vmem>>, vector<1x1x128xf32>
    %7 = vector.shape_cast %6 : vector<1x1x128xf32> to vector<1x128xf32>
    %8 = vector.broadcast %7 : vector<1x128xf32> to vector<64x128xf32>
    %9 = arith.addf %5, %8 : vector<64x128xf32>
    %10 = vector.shape_cast %9 : vector<64x128xf32> to vector<8x8x128xf32>
    %c0_8 = arith.constant 0 : index
    %c0_9 = arith.constant 0 : index
    %c0_10 = arith.constant 0 : index
    %c0_11 = arith.constant 0 : index
    %11 = vector.load %arg4[%c0_8, %c0_9, %c0_10, %c0_11] : memref<1x8x8x128xf32, #tpu.memory_space<vmem>>, vector<1x8x8x128xf32>
    %12 = vector.shape_cast %11 : vector<1x8x8x128xf32> to vector<8x8x128xf32>
    %13 = vector.shape_cast %10 : vector<8x8x128xf32> to vector<1x8x8x128xf32>
    tpu.vector_store %arg4[%c0_8, %c0_9, %c0_10, %c0_11], %13 {strides = array<i32>} : memref<1x8x8x128xf32, #tpu.memory_space<vmem>>, vector<1x8x8x128xf32>,
    return
  }
  func.func @transform_0(%arg0: i32) -> (i32, i32, i32) {
    %c0_i32 = arith.constant 0 : i32
    %c0_i32_0 = arith.constant 0 : i32
    %c0_i32_1 = arith.constant 0 : i32
    %c0_i32_2 = arith.constant 0 : i32
    return %c0_i32, %c0_i32_0, %c0_i32_1 : i32, i32, i32
  }
  func.func @transform_1(%arg0: i32) -> (i32, i32, i32) {
    %c0_i32 = arith.constant 0 : i32
    %c0_i32_0 = arith.constant 0 : i32
    %c0_i32_1 = arith.constant 0 : i32
    return %arg0, %c0_i32, %c0_i32_0 : i32, i32, i32
  }
  func.func @transform_2(%arg0: i32) -> (i32, i32, i32) {
    %c0_i32 = arith.constant 0 : i32
    %c0_i32_0 = arith.constant 0 : i32
    %c0_i32_1 = arith.constant 0 : i32
    return %arg0, %c0_i32, %c0_i32_0 : i32, i32, i32
  }
  func.func @transform_3(%arg0: i32) -> (i32, i32, i32, i32) {
    %c0_i32 = arith.constant 0 : i32
    %c0_i32_0 = arith.constant 0 : i32
    %c0_i32_1 = arith.constant 0 : i32
    %c0_i32_2 = arith.constant 0 : i32
    return %arg0, %c0_i32, %c0_i32_0, %c0_i32_1 : i32, i32, i32, i32
  }
}

module attributes {stable_mosaic.version = 11 : i64} {
  func.func @_head_kernel(%arg0: i32, %arg1: memref<2x1x8x32xf32, #tpu.memory_space<vmem>>, %arg2: memref<2x1x32xf32, #tpu.memory_space<vmem>>, %arg3: memref<1x1xf32, #tpu.memory_space<vmem>>, %arg4: memref<8x1xf32, #tpu.memory_space<vmem>>) attributes {dimension_semantics = [#tpu.dimension_semantics<arbitrary>], iteration_bounds = array<i64: 1>, scalar_prefetch = 0 : i64, scratch_operands = 0 : i64, tpu.core_type = #tpu.core_type<tc>, window_params = [{transform_indices = @transform_0, window_bounds = array<i64: 2, 1, 8, 32>}, {pipeline_mode = #tpu.pipeline_mode<synchronous>, transform_indices = @transform_1, window_bounds = array<i64: 2, 1, 32>}, {pipeline_mode = #tpu.pipeline_mode<synchronous>, transform_indices = @transform_2, window_bounds = array<i64: 1, 1>}, {pipeline_mode = #tpu.pipeline_mode<synchronous>, transform_indices = @transform_3, window_bounds = array<i64: 8, 1>}]} {
    %c0 = arith.constant 0 : index
    %c0_0 = arith.constant 0 : index
    %c0_1 = arith.constant 0 : index
    %c0_2 = arith.constant 0 : index
    %0 = vector.load %arg1[%c0, %c0_0, %c0_1, %c0_2] : memref<2x1x8x32xf32, #tpu.memory_space<vmem>>, vector<1x1x8x32xf32>
    %1 = vector.shape_cast %0 : vector<1x1x8x32xf32> to vector<8x32xf32>
    %c0_3 = arith.constant 0 : index
    %c0_4 = arith.constant 0 : index
    %c0_5 = arith.constant 0 : index
    %2 = vector.load %arg2[%c0_3, %c0_4, %c0_5] : memref<2x1x32xf32, #tpu.memory_space<vmem>>, vector<1x1x32xf32>
    %3 = vector.shape_cast %2 : vector<1x1x32xf32> to vector<1x32xf32>
    %4 = vector.broadcast %3 : vector<1x32xf32> to vector<8x32xf32>
    %5 = arith.mulf %1, %4 : vector<8x32xf32>
    %cst = arith.constant dense<0.000000e+00> : vector<8xf32>
    %6 = vector.multi_reduction <add>, %5, %cst [1] : vector<8x32xf32> to vector<8xf32>
    %7 = vector.shape_cast %6 : vector<8xf32> to vector<8x1xf32>
    %c1 = arith.constant 1 : index
    %c0_6 = arith.constant 0 : index
    %c0_7 = arith.constant 0 : index
    %c0_8 = arith.constant 0 : index
    %8 = vector.load %arg1[%c1, %c0_6, %c0_7, %c0_8] : memref<2x1x8x32xf32, #tpu.memory_space<vmem>>, vector<1x1x8x32xf32>
    %9 = vector.shape_cast %8 : vector<1x1x8x32xf32> to vector<8x32xf32>
    %c1_9 = arith.constant 1 : index
    %c0_10 = arith.constant 0 : index
    %c0_11 = arith.constant 0 : index
    %10 = vector.load %arg2[%c1_9, %c0_10, %c0_11] : memref<2x1x32xf32, #tpu.memory_space<vmem>>, vector<1x1x32xf32>
    %11 = vector.shape_cast %10 : vector<1x1x32xf32> to vector<1x32xf32>
    %12 = vector.broadcast %11 : vector<1x32xf32> to vector<8x32xf32>
    %13 = arith.mulf %9, %12 : vector<8x32xf32>
    %cst_12 = arith.constant dense<0.000000e+00> : vector<8xf32>
    %14 = vector.multi_reduction <add>, %13, %cst_12 [1] : vector<8x32xf32> to vector<8xf32>
    %15 = vector.shape_cast %14 : vector<8xf32> to vector<8x1xf32>
    %16 = arith.addf %7, %15 : vector<8x1xf32>
    %c0_13 = arith.constant 0 : index
    %c0_14 = arith.constant 0 : index
    %17 = vector.load %arg3[%c0_13, %c0_14] : memref<1x1xf32, #tpu.memory_space<vmem>>, vector<1x1xf32>
    %18 = vector.broadcast %17 : vector<1x1xf32> to vector<8x1xf32>
    %19 = arith.addf %16, %18 : vector<8x1xf32>
    %20 = arith.negf %19 : vector<8x1xf32>
    %21 = math.exp %20 : vector<8x1xf32>
    %cst_15 = arith.constant 1.000000e+00 : f32
    %22 = vector.broadcast %cst_15 : f32 to vector<8x1xf32>
    %23 = arith.addf %22, %21 : vector<8x1xf32>
    %24 = arith.divf %22, %23 : vector<8x1xf32>
    %c0_16 = arith.constant 0 : index
    %c0_17 = arith.constant 0 : index
    %25 = vector.load %arg4[%c0_16, %c0_17] : memref<8x1xf32, #tpu.memory_space<vmem>>, vector<8x1xf32>
    tpu.vector_store %arg4[%c0_16, %c0_17], %24 {strides = array<i32>} : memref<8x1xf32, #tpu.memory_space<vmem>>, vector<8x1xf32>,
    return
  }
  func.func @transform_0(%arg0: i32) -> (i32, i32, i32, i32) {
    %c0_i32 = arith.constant 0 : i32
    %c7_i32 = arith.constant 7 : i32
    %c0_i32_0 = arith.constant 0 : i32
    %c0_i32_1 = arith.constant 0 : i32
    %c0_i32_2 = arith.constant 0 : i32
    return %c0_i32, %c7_i32, %c0_i32_0, %c0_i32_1 : i32, i32, i32, i32
  }
  func.func @transform_1(%arg0: i32) -> (i32, i32, i32) {
    %c0_i32 = arith.constant 0 : i32
    %c0_i32_0 = arith.constant 0 : i32
    %c0_i32_1 = arith.constant 0 : i32
    %c0_i32_2 = arith.constant 0 : i32
    return %c0_i32, %c0_i32_0, %c0_i32_1 : i32, i32, i32
  }
  func.func @transform_2(%arg0: i32) -> (i32, i32) {
    %c0_i32 = arith.constant 0 : i32
    %c0_i32_0 = arith.constant 0 : i32
    %c0_i32_1 = arith.constant 0 : i32
    return %c0_i32, %c0_i32_0 : i32, i32
  }
  func.func @transform_3(%arg0: i32) -> (i32, i32) {
    %c0_i32 = arith.constant 0 : i32
    %c0_i32_0 = arith.constant 0 : i32
    %c0_i32_1 = arith.constant 0 : i32
    return %c0_i32, %c0_i32_0 : i32, i32
  }
}

module attributes {stable_mosaic.version = 11 : i64} {
  func.func @_proj_hidden_kernel(%arg0: i32, %arg1: memref<2x8x8x32xf32, #tpu.memory_space<vmem>>, %arg2: memref<1x64x128xbf16, #tpu.memory_space<vmem>>, %arg3: memref<1x1x128xf32, #tpu.memory_space<vmem>>, %arg4: memref<1x8x8x128xf32, #tpu.memory_space<vmem>>) attributes {dimension_semantics = [#tpu.dimension_semantics<parallel>], iteration_bounds = array<i64: 2>, scalar_prefetch = 0 : i64, scratch_operands = 0 : i64, tpu.core_type = #tpu.core_type<tc>, window_params = [{pipeline_mode = #tpu.pipeline_mode<synchronous>, transform_indices = @transform_0, window_bounds = array<i64: 2, 8, 8, 32>}, {transform_indices = @transform_1, window_bounds = array<i64: 1, 64, 128>}, {transform_indices = @transform_2, window_bounds = array<i64: 1, 1, 128>}, {transform_indices = @transform_3, window_bounds = array<i64: 1, 8, 8, 128>}]} {
    %c0 = arith.constant 0 : index
    %c0_0 = arith.constant 0 : index
    %c0_1 = arith.constant 0 : index
    %0 = vector.load %arg2[%c0, %c0_0, %c0_1] : memref<1x64x128xbf16, #tpu.memory_space<vmem>>, vector<1x64x128xbf16>
    %1 = vector.shape_cast %0 : vector<1x64x128xbf16> to vector<64x128xbf16>
    %c0_2 = arith.constant 0 : index
    %c0_3 = arith.constant 0 : index
    %c0_4 = arith.constant 0 : index
    %c0_5 = arith.constant 0 : index
    %2 = vector.load %arg1[%c0_2, %c0_3, %c0_4, %c0_5] : memref<2x8x8x32xf32, #tpu.memory_space<vmem>>, vector<1x8x8x32xf32>
    %3 = vector.shape_cast %2 : vector<1x8x8x32xf32> to vector<8x8x32xf32>
    %4 = vector.shape_cast %3 : vector<8x8x32xf32> to vector<64x32xf32>
    %5 = arith.truncf %4 : vector<64x32xf32> to vector<64x32xbf16>
    %c1 = arith.constant 1 : index
    %c0_6 = arith.constant 0 : index
    %c0_7 = arith.constant 0 : index
    %c0_8 = arith.constant 0 : index
    %6 = vector.load %arg1[%c1, %c0_6, %c0_7, %c0_8] : memref<2x8x8x32xf32, #tpu.memory_space<vmem>>, vector<1x8x8x32xf32>
    %7 = vector.shape_cast %6 : vector<1x8x8x32xf32> to vector<8x8x32xf32>
    %8 = vector.shape_cast %7 : vector<8x8x32xf32> to vector<64x32xf32>
    %9 = arith.truncf %8 : vector<64x32xf32> to vector<64x32xbf16>
    %10 = vector.extract_strided_slice %1 {offsets = [0, 0], sizes = [32, 128], strides = [1, 1]} : vector<64x128xbf16> to vector<32x128xbf16>
    %cst = arith.constant dense<0.000000e+00> : vector<64x128xf32>
    %11 = tpu.matmul %5, %10, %cst {dimension_numbers = #tpu.dot_dimension_numbers<[1], [0], [0], [1], [0, 0, 1, 1], [], []>} : vector<64x32xbf16>, vector<32x128xbf16>, vector<64x128xf32> -> vector<64x128xf32>
    %12 = vector.extract_strided_slice %1 {offsets = [32, 0], sizes = [32, 128], strides = [1, 1]} : vector<64x128xbf16> to vector<32x128xbf16>
    %cst_9 = arith.constant dense<0.000000e+00> : vector<64x128xf32>
    %13 = tpu.matmul %9, %12, %cst_9 {dimension_numbers = #tpu.dot_dimension_numbers<[1], [0], [0], [1], [0, 0, 1, 1], [], []>} : vector<64x32xbf16>, vector<32x128xbf16>, vector<64x128xf32> -> vector<64x128xf32>
    %14 = arith.addf %11, %13 : vector<64x128xf32>
    %c0_10 = arith.constant 0 : index
    %c0_11 = arith.constant 0 : index
    %c0_12 = arith.constant 0 : index
    %15 = vector.load %arg3[%c0_10, %c0_11, %c0_12] : memref<1x1x128xf32, #tpu.memory_space<vmem>>, vector<1x1x128xf32>
    %16 = vector.shape_cast %15 : vector<1x1x128xf32> to vector<1x128xf32>
    %17 = vector.broadcast %16 : vector<1x128xf32> to vector<64x128xf32>
    %18 = arith.addf %14, %17 : vector<64x128xf32>
    %19 = vector.shape_cast %18 : vector<64x128xf32> to vector<8x8x128xf32>
    %c0_13 = arith.constant 0 : index
    %c0_14 = arith.constant 0 : index
    %c0_15 = arith.constant 0 : index
    %c0_16 = arith.constant 0 : index
    %20 = vector.load %arg4[%c0_13, %c0_14, %c0_15, %c0_16] : memref<1x8x8x128xf32, #tpu.memory_space<vmem>>, vector<1x8x8x128xf32>
    %21 = vector.shape_cast %20 : vector<1x8x8x128xf32> to vector<8x8x128xf32>
    %22 = vector.shape_cast %19 : vector<8x8x128xf32> to vector<1x8x8x128xf32>
    tpu.vector_store %arg4[%c0_13, %c0_14, %c0_15, %c0_16], %22 {strides = array<i32>} : memref<1x8x8x128xf32, #tpu.memory_space<vmem>>, vector<1x8x8x128xf32>,
    return
  }
  func.func @transform_0(%arg0: i32) -> (i32, i32, i32, i32) {
    %c0_i32 = arith.constant 0 : i32
    %c0_i32_0 = arith.constant 0 : i32
    %c0_i32_1 = arith.constant 0 : i32
    %c0_i32_2 = arith.constant 0 : i32
    %c0_i32_3 = arith.constant 0 : i32
    return %c0_i32, %c0_i32_0, %c0_i32_1, %c0_i32_2 : i32, i32, i32, i32
  }
  func.func @transform_1(%arg0: i32) -> (i32, i32, i32) {
    %c0_i32 = arith.constant 0 : i32
    %c0_i32_0 = arith.constant 0 : i32
    %c0_i32_1 = arith.constant 0 : i32
    return %arg0, %c0_i32, %c0_i32_0 : i32, i32, i32
  }
  func.func @transform_2(%arg0: i32) -> (i32, i32, i32) {
    %c0_i32 = arith.constant 0 : i32
    %c0_i32_0 = arith.constant 0 : i32
    %c0_i32_1 = arith.constant 0 : i32
    return %arg0, %c0_i32, %c0_i32_0 : i32, i32, i32
  }
  func.func @transform_3(%arg0: i32) -> (i32, i32, i32, i32) {
    %c0_i32 = arith.constant 0 : i32
    %c0_i32_0 = arith.constant 0 : i32
    %c0_i32_1 = arith.constant 0 : i32
    %c0_i32_2 = arith.constant 0 : i32
    return %arg0, %c0_i32, %c0_i32_0, %c0_i32_1 : i32, i32, i32, i32
  }
}

module attributes {stable_mosaic.version = 11 : i64} {
  func.func @_bilstm_recurrence_kernel(%arg0: i32, %arg1: memref<1x8x8x128xf32, #tpu.memory_space<vmem>>, %arg2: memref<1x32x128xbf16, #tpu.memory_space<vmem>>, %arg3: memref<1x8x8x32xf32, #tpu.memory_space<vmem>>) attributes {dimension_semantics = [#tpu.dimension_semantics<parallel>], iteration_bounds = array<i64: 2>, scalar_prefetch = 0 : i64, scratch_operands = 0 : i64, tpu.core_type = #tpu.core_type<tc>, window_params = [{transform_indices = @transform_0, window_bounds = array<i64: 1, 8, 8, 128>}, {transform_indices = @transform_1, window_bounds = array<i64: 1, 32, 128>}, {transform_indices = @transform_2, window_bounds = array<i64: 1, 8, 8, 32>}]} {
    %c0 = arith.constant 0 : index
    %c0_0 = arith.constant 0 : index
    %c0_1 = arith.constant 0 : index
    %0 = vector.load %arg2[%c0, %c0_0, %c0_1] : memref<1x32x128xbf16, #tpu.memory_space<vmem>>, vector<1x32x128xbf16>
    %1 = vector.shape_cast %0 : vector<1x32x128xbf16> to vector<32x128xbf16>
    %cst = arith.constant 0.000000e+00 : f32
    %2 = vector.broadcast %cst : f32 to vector<8x32xf32>
    %cst_2 = arith.constant 0.000000e+00 : f32
    %3 = vector.broadcast %cst_2 : f32 to vector<8x32xf32>
    %c0_i32 = arith.constant 0 : i32
    %c0_i32_3 = arith.constant 0 : i32
    %4 = arith.cmpi eq, %arg0, %c0_i32_3 : i32
    %c7_i32 = arith.constant 7 : i32
    %5 = arith.subi %c7_i32, %c0_i32 : i32
    %6 = arith.select %4, %c0_i32, %5 : i32
    %c0_4 = arith.constant 0 : index
    %7 = arith.index_cast %6 : i32 to index
    %c0_5 = arith.constant 0 : index
    %c0_6 = arith.constant 0 : index
    %8 = vector.load %arg1[%c0_4, %7, %c0_5, %c0_6] : memref<1x8x8x128xf32, #tpu.memory_space<vmem>>, vector<1x1x8x128xf32>
    %9 = vector.shape_cast %8 : vector<1x1x8x128xf32> to vector<8x128xf32>
    %10 = arith.truncf %2 : vector<8x32xf32> to vector<8x32xbf16>
    %cst_7 = arith.constant dense<0.000000e+00> : vector<8x128xf32>
    %11 = tpu.matmul %10, %1, %cst_7 {dimension_numbers = #tpu.dot_dimension_numbers<[1], [0], [0], [1], [0, 0, 1, 1], [], []>} : vector<8x32xbf16>, vector<32x128xbf16>, vector<8x128xf32> -> vector<8x128xf32>
    %12 = arith.addf %9, %11 : vector<8x128xf32>
    %13 = vector.extract_strided_slice %12 {offsets = [0, 0], sizes = [8, 32], strides = [1, 1]} : vector<8x128xf32> to vector<8x32xf32>
    %14 = arith.negf %13 : vector<8x32xf32>
    %15 = math.exp %14 : vector<8x32xf32>
    %cst_8 = arith.constant 1.000000e+00 : f32
    %16 = vector.broadcast %cst_8 : f32 to vector<8x32xf32>
    %17 = arith.addf %16, %15 : vector<8x32xf32>
    %18 = arith.divf %16, %17 : vector<8x32xf32>
    %19 = vector.extract_strided_slice %12 {offsets = [0, 32], sizes = [8, 32], strides = [1, 1]} : vector<8x128xf32> to vector<8x32xf32>
    %20 = arith.negf %19 : vector<8x32xf32>
    %21 = math.exp %20 : vector<8x32xf32>
    %cst_9 = arith.constant 1.000000e+00 : f32
    %22 = vector.broadcast %cst_9 : f32 to vector<8x32xf32>
    %23 = arith.addf %22, %21 : vector<8x32xf32>
    %24 = arith.divf %22, %23 : vector<8x32xf32>
    %25 = vector.extract_strided_slice %12 {offsets = [0, 64], sizes = [8, 32], strides = [1, 1]} : vector<8x128xf32> to vector<8x32xf32>
    %26 = math.tanh %25 : vector<8x32xf32>
    %27 = vector.extract_strided_slice %12 {offsets = [0, 96], sizes = [8, 32], strides = [1, 1]} : vector<8x128xf32> to vector<8x32xf32>
    %28 = arith.negf %27 : vector<8x32xf32>
    %29 = math.exp %28 : vector<8x32xf32>
    %cst_10 = arith.constant 1.000000e+00 : f32
    %30 = vector.broadcast %cst_10 : f32 to vector<8x32xf32>
    %31 = arith.addf %30, %29 : vector<8x32xf32>
    %32 = arith.divf %30, %31 : vector<8x32xf32>
    %33 = arith.mulf %24, %3 : vector<8x32xf32>
    %34 = arith.mulf %18, %26 : vector<8x32xf32>
    %35 = arith.addf %33, %34 : vector<8x32xf32>
    %36 = math.tanh %35 : vector<8x32xf32>
    %37 = arith.mulf %32, %36 : vector<8x32xf32>
    %c0_11 = arith.constant 0 : index
    %38 = arith.index_cast %6 : i32 to index
    %c0_12 = arith.constant 0 : index
    %c0_13 = arith.constant 0 : index
    %39 = vector.load %arg3[%c0_11, %38, %c0_12, %c0_13] : memref<1x8x8x32xf32, #tpu.memory_space<vmem>>, vector<1x1x8x32xf32>
    %40 = vector.shape_cast %39 : vector<1x1x8x32xf32> to vector<8x32xf32>
    %41 = vector.shape_cast %37 : vector<8x32xf32> to vector<1x1x8x32xf32>
    tpu.vector_store %arg3[%c0_11, %38, %c0_12, %c0_13], %41 {strides = array<i32>} : memref<1x8x8x32xf32, #tpu.memory_space<vmem>>, vector<1x1x8x32xf32>,
    %c1_i32 = arith.constant 1 : i32
    %c0_i32_14 = arith.constant 0 : i32
    %42 = arith.cmpi eq, %arg0, %c0_i32_14 : i32
    %c7_i32_15 = arith.constant 7 : i32
    %43 = arith.subi %c7_i32_15, %c1_i32 : i32
    %44 = arith.select %42, %c1_i32, %43 : i32
    %c0_16 = arith.constant 0 : index
    %45 = arith.index_cast %44 : i32 to index
    %c0_17 = arith.constant 0 : index
    %c0_18 = arith.constant 0 : index
    %46 = vector.load %arg1[%c0_16, %45, %c0_17, %c0_18] : memref<1x8x8x128xf32, #tpu.memory_space<vmem>>, vector<1x1x8x128xf32>
    %47 = vector.shape_cast %46 : vector<1x1x8x128xf32> to vector<8x128xf32>
    %48 = arith.truncf %37 : vector<8x32xf32> to vector<8x32xbf16>
    %cst_19 = arith.constant dense<0.000000e+00> : vector<8x128xf32>
    %49 = tpu.matmul %48, %1, %cst_19 {dimension_numbers = #tpu.dot_dimension_numbers<[1], [0], [0], [1], [0, 0, 1, 1], [], []>} : vector<8x32xbf16>, vector<32x128xbf16>, vector<8x128xf32> -> vector<8x128xf32>
    %50 = arith.addf %47, %49 : vector<8x128xf32>
    %51 = vector.extract_strided_slice %50 {offsets = [0, 0], sizes = [8, 32], strides = [1, 1]} : vector<8x128xf32> to vector<8x32xf32>
    %52 = arith.negf %51 : vector<8x32xf32>
    %53 = math.exp %52 : vector<8x32xf32>
    %cst_20 = arith.constant 1.000000e+00 : f32
    %54 = vector.broadcast %cst_20 : f32 to vector<8x32xf32>
    %55 = arith.addf %54, %53 : vector<8x32xf32>
    %56 = arith.divf %54, %55 : vector<8x32xf32>
    %57 = vector.extract_strided_slice %50 {offsets = [0, 32], sizes = [8, 32], strides = [1, 1]} : vector<8x128xf32> to vector<8x32xf32>
    %58 = arith.negf %57 : vector<8x32xf32>
    %59 = math.exp %58 : vector<8x32xf32>
    %cst_21 = arith.constant 1.000000e+00 : f32
    %60 = vector.broadcast %cst_21 : f32 to vector<8x32xf32>
    %61 = arith.addf %60, %59 : vector<8x32xf32>
    %62 = arith.divf %60, %61 : vector<8x32xf32>
    %63 = vector.extract_strided_slice %50 {offsets = [0, 64], sizes = [8, 32], strides = [1, 1]} : vector<8x128xf32> to vector<8x32xf32>
    %64 = math.tanh %63 : vector<8x32xf32>
    %65 = vector.extract_strided_slice %50 {offsets = [0, 96], sizes = [8, 32], strides = [1, 1]} : vector<8x128xf32> to vector<8x32xf32>
    %66 = arith.negf %65 : vector<8x32xf32>
    %67 = math.exp %66 : vector<8x32xf32>
    %cst_22 = arith.constant 1.000000e+00 : f32
    %68 = vector.broadcast %cst_22 : f32 to vector<8x32xf32>
    %69 = arith.addf %68, %67 : vector<8x32xf32>
    %70 = arith.divf %68, %69 : vector<8x32xf32>
    %71 = arith.mulf %62, %35 : vector<8x32xf32>
    %72 = arith.mulf %56, %64 : vector<8x32xf32>
    %73 = arith.addf %71, %72 : vector<8x32xf32>
    %74 = math.tanh %73 : vector<8x32xf32>
    %75 = arith.mulf %70, %74 : vector<8x32xf32>
    %c0_23 = arith.constant 0 : index
    %76 = arith.index_cast %44 : i32 to index
    %c0_24 = arith.constant 0 : index
    %c0_25 = arith.constant 0 : index
    %77 = vector.load %arg3[%c0_23, %76, %c0_24, %c0_25] : memref<1x8x8x32xf32, #tpu.memory_space<vmem>>, vector<1x1x8x32xf32>
    %78 = vector.shape_cast %77 : vector<1x1x8x32xf32> to vector<8x32xf32>
    %79 = vector.shape_cast %75 : vector<8x32xf32> to vector<1x1x8x32xf32>
    tpu.vector_store %arg3[%c0_23, %76, %c0_24, %c0_25], %79 {strides = array<i32>} : memref<1x8x8x32xf32, #tpu.memory_space<vmem>>, vector<1x1x8x32xf32>,
    %c2_i32 = arith.constant 2 : i32
    %c0_i32_26 = arith.constant 0 : i32
    %80 = arith.cmpi eq, %arg0, %c0_i32_26 : i32
    %c7_i32_27 = arith.constant 7 : i32
    %81 = arith.subi %c7_i32_27, %c2_i32 : i32
    %82 = arith.select %80, %c2_i32, %81 : i32
    %c0_28 = arith.constant 0 : index
    %83 = arith.index_cast %82 : i32 to index
    %c0_29 = arith.constant 0 : index
    %c0_30 = arith.constant 0 : index
    %84 = vector.load %arg1[%c0_28, %83, %c0_29, %c0_30] : memref<1x8x8x128xf32, #tpu.memory_space<vmem>>, vector<1x1x8x128xf32>
    %85 = vector.shape_cast %84 : vector<1x1x8x128xf32> to vector<8x128xf32>
    %86 = arith.truncf %75 : vector<8x32xf32> to vector<8x32xbf16>
    %cst_31 = arith.constant dense<0.000000e+00> : vector<8x128xf32>
    %87 = tpu.matmul %86, %1, %cst_31 {dimension_numbers = #tpu.dot_dimension_numbers<[1], [0], [0], [1], [0, 0, 1, 1], [], []>} : vector<8x32xbf16>, vector<32x128xbf16>, vector<8x128xf32> -> vector<8x128xf32>
    %88 = arith.addf %85, %87 : vector<8x128xf32>
    %89 = vector.extract_strided_slice %88 {offsets = [0, 0], sizes = [8, 32], strides = [1, 1]} : vector<8x128xf32> to vector<8x32xf32>
    %90 = arith.negf %89 : vector<8x32xf32>
    %91 = math.exp %90 : vector<8x32xf32>
    %cst_32 = arith.constant 1.000000e+00 : f32
    %92 = vector.broadcast %cst_32 : f32 to vector<8x32xf32>
    %93 = arith.addf %92, %91 : vector<8x32xf32>
    %94 = arith.divf %92, %93 : vector<8x32xf32>
    %95 = vector.extract_strided_slice %88 {offsets = [0, 32], sizes = [8, 32], strides = [1, 1]} : vector<8x128xf32> to vector<8x32xf32>
    %96 = arith.negf %95 : vector<8x32xf32>
    %97 = math.exp %96 : vector<8x32xf32>
    %cst_33 = arith.constant 1.000000e+00 : f32
    %98 = vector.broadcast %cst_33 : f32 to vector<8x32xf32>
    %99 = arith.addf %98, %97 : vector<8x32xf32>
    %100 = arith.divf %98, %99 : vector<8x32xf32>
    %101 = vector.extract_strided_slice %88 {offsets = [0, 64], sizes = [8, 32], strides = [1, 1]} : vector<8x128xf32> to vector<8x32xf32>
    %102 = math.tanh %101 : vector<8x32xf32>
    %103 = vector.extract_strided_slice %88 {offsets = [0, 96], sizes = [8, 32], strides = [1, 1]} : vector<8x128xf32> to vector<8x32xf32>
    %104 = arith.negf %103 : vector<8x32xf32>
    %105 = math.exp %104 : vector<8x32xf32>
    %cst_34 = arith.constant 1.000000e+00 : f32
    %106 = vector.broadcast %cst_34 : f32 to vector<8x32xf32>
    %107 = arith.addf %106, %105 : vector<8x32xf32>
    %108 = arith.divf %106, %107 : vector<8x32xf32>
    %109 = arith.mulf %100, %73 : vector<8x32xf32>
    %110 = arith.mulf %94, %102 : vector<8x32xf32>
    %111 = arith.addf %109, %110 : vector<8x32xf32>
    %112 = math.tanh %111 : vector<8x32xf32>
    %113 = arith.mulf %108, %112 : vector<8x32xf32>
    %c0_35 = arith.constant 0 : index
    %114 = arith.index_cast %82 : i32 to index
    %c0_36 = arith.constant 0 : index
    %c0_37 = arith.constant 0 : index
    %115 = vector.load %arg3[%c0_35, %114, %c0_36, %c0_37] : memref<1x8x8x32xf32, #tpu.memory_space<vmem>>, vector<1x1x8x32xf32>
    %116 = vector.shape_cast %115 : vector<1x1x8x32xf32> to vector<8x32xf32>
    %117 = vector.shape_cast %113 : vector<8x32xf32> to vector<1x1x8x32xf32>
    tpu.vector_store %arg3[%c0_35, %114, %c0_36, %c0_37], %117 {strides = array<i32>} : memref<1x8x8x32xf32, #tpu.memory_space<vmem>>, vector<1x1x8x32xf32>,
    %c3_i32 = arith.constant 3 : i32
    %c0_i32_38 = arith.constant 0 : i32
    %118 = arith.cmpi eq, %arg0, %c0_i32_38 : i32
    %c7_i32_39 = arith.constant 7 : i32
    %119 = arith.subi %c7_i32_39, %c3_i32 : i32
    %120 = arith.select %118, %c3_i32, %119 : i32
    %c0_40 = arith.constant 0 : index
    %121 = arith.index_cast %120 : i32 to index
    %c0_41 = arith.constant 0 : index
    %c0_42 = arith.constant 0 : index
    %122 = vector.load %arg1[%c0_40, %121, %c0_41, %c0_42] : memref<1x8x8x128xf32, #tpu.memory_space<vmem>>, vector<1x1x8x128xf32>
    %123 = vector.shape_cast %122 : vector<1x1x8x128xf32> to vector<8x128xf32>
    %124 = arith.truncf %113 : vector<8x32xf32> to vector<8x32xbf16>
    %cst_43 = arith.constant dense<0.000000e+00> : vector<8x128xf32>
    %125 = tpu.matmul %124, %1, %cst_43 {dimension_numbers = #tpu.dot_dimension_numbers<[1], [0], [0], [1], [0, 0, 1, 1], [], []>} : vector<8x32xbf16>, vector<32x128xbf16>, vector<8x128xf32> -> vector<8x128xf32>
    %126 = arith.addf %123, %125 : vector<8x128xf32>
    %127 = vector.extract_strided_slice %126 {offsets = [0, 0], sizes = [8, 32], strides = [1, 1]} : vector<8x128xf32> to vector<8x32xf32>
    %128 = arith.negf %127 : vector<8x32xf32>
    %129 = math.exp %128 : vector<8x32xf32>
    %cst_44 = arith.constant 1.000000e+00 : f32
    %130 = vector.broadcast %cst_44 : f32 to vector<8x32xf32>
    %131 = arith.addf %130, %129 : vector<8x32xf32>
    %132 = arith.divf %130, %131 : vector<8x32xf32>
    %133 = vector.extract_strided_slice %126 {offsets = [0, 32], sizes = [8, 32], strides = [1, 1]} : vector<8x128xf32> to vector<8x32xf32>
    %134 = arith.negf %133 : vector<8x32xf32>
    %135 = math.exp %134 : vector<8x32xf32>
    %cst_45 = arith.constant 1.000000e+00 : f32
    %136 = vector.broadcast %cst_45 : f32 to vector<8x32xf32>
    %137 = arith.addf %136, %135 : vector<8x32xf32>
    %138 = arith.divf %136, %137 : vector<8x32xf32>
    %139 = vector.extract_strided_slice %126 {offsets = [0, 64], sizes = [8, 32], strides = [1, 1]} : vector<8x128xf32> to vector<8x32xf32>
    %140 = math.tanh %139 : vector<8x32xf32>
    %141 = vector.extract_strided_slice %126 {offsets = [0, 96], sizes = [8, 32], strides = [1, 1]} : vector<8x128xf32> to vector<8x32xf32>
    %142 = arith.negf %141 : vector<8x32xf32>
    %143 = math.exp %142 : vector<8x32xf32>
    %cst_46 = arith.constant 1.000000e+00 : f32
    %144 = vector.broadcast %cst_46 : f32 to vector<8x32xf32>
    %145 = arith.addf %144, %143 : vector<8x32xf32>
    %146 = arith.divf %144, %145 : vector<8x32xf32>
    %147 = arith.mulf %138, %111 : vector<8x32xf32>
    %148 = arith.mulf %132, %140 : vector<8x32xf32>
    %149 = arith.addf %147, %148 : vector<8x32xf32>
    %150 = math.tanh %149 : vector<8x32xf32>
    %151 = arith.mulf %146, %150 : vector<8x32xf32>
    %c0_47 = arith.constant 0 : index
    %152 = arith.index_cast %120 : i32 to index
    %c0_48 = arith.constant 0 : index
    %c0_49 = arith.constant 0 : index
    %153 = vector.load %arg3[%c0_47, %152, %c0_48, %c0_49] : memref<1x8x8x32xf32, #tpu.memory_space<vmem>>, vector<1x1x8x32xf32>
    %154 = vector.shape_cast %153 : vector<1x1x8x32xf32> to vector<8x32xf32>
    %155 = vector.shape_cast %151 : vector<8x32xf32> to vector<1x1x8x32xf32>
    tpu.vector_store %arg3[%c0_47, %152, %c0_48, %c0_49], %155 {strides = array<i32>} : memref<1x8x8x32xf32, #tpu.memory_space<vmem>>, vector<1x1x8x32xf32>,
    %c4_i32 = arith.constant 4 : i32
    %c0_i32_50 = arith.constant 0 : i32
    %156 = arith.cmpi eq, %arg0, %c0_i32_50 : i32
    %c7_i32_51 = arith.constant 7 : i32
    %157 = arith.subi %c7_i32_51, %c4_i32 : i32
    %158 = arith.select %156, %c4_i32, %157 : i32
    %c0_52 = arith.constant 0 : index
    %159 = arith.index_cast %158 : i32 to index
    %c0_53 = arith.constant 0 : index
    %c0_54 = arith.constant 0 : index
    %160 = vector.load %arg1[%c0_52, %159, %c0_53, %c0_54] : memref<1x8x8x128xf32, #tpu.memory_space<vmem>>, vector<1x1x8x128xf32>
    %161 = vector.shape_cast %160 : vector<1x1x8x128xf32> to vector<8x128xf32>
    %162 = arith.truncf %151 : vector<8x32xf32> to vector<8x32xbf16>
    %cst_55 = arith.constant dense<0.000000e+00> : vector<8x128xf32>
    %163 = tpu.matmul %162, %1, %cst_55 {dimension_numbers = #tpu.dot_dimension_numbers<[1], [0], [0], [1], [0, 0, 1, 1], [], []>} : vector<8x32xbf16>, vector<32x128xbf16>, vector<8x128xf32> -> vector<8x128xf32>
    %164 = arith.addf %161, %163 : vector<8x128xf32>
    %165 = vector.extract_strided_slice %164 {offsets = [0, 0], sizes = [8, 32], strides = [1, 1]} : vector<8x128xf32> to vector<8x32xf32>
    %166 = arith.negf %165 : vector<8x32xf32>
    %167 = math.exp %166 : vector<8x32xf32>
    %cst_56 = arith.constant 1.000000e+00 : f32
    %168 = vector.broadcast %cst_56 : f32 to vector<8x32xf32>
    %169 = arith.addf %168, %167 : vector<8x32xf32>
    %170 = arith.divf %168, %169 : vector<8x32xf32>
    %171 = vector.extract_strided_slice %164 {offsets = [0, 32], sizes = [8, 32], strides = [1, 1]} : vector<8x128xf32> to vector<8x32xf32>
    %172 = arith.negf %171 : vector<8x32xf32>
    %173 = math.exp %172 : vector<8x32xf32>
    %cst_57 = arith.constant 1.000000e+00 : f32
    %174 = vector.broadcast %cst_57 : f32 to vector<8x32xf32>
    %175 = arith.addf %174, %173 : vector<8x32xf32>
    %176 = arith.divf %174, %175 : vector<8x32xf32>
    %177 = vector.extract_strided_slice %164 {offsets = [0, 64], sizes = [8, 32], strides = [1, 1]} : vector<8x128xf32> to vector<8x32xf32>
    %178 = math.tanh %177 : vector<8x32xf32>
    %179 = vector.extract_strided_slice %164 {offsets = [0, 96], sizes = [8, 32], strides = [1, 1]} : vector<8x128xf32> to vector<8x32xf32>
    %180 = arith.negf %179 : vector<8x32xf32>
    %181 = math.exp %180 : vector<8x32xf32>
    %cst_58 = arith.constant 1.000000e+00 : f32
    %182 = vector.broadcast %cst_58 : f32 to vector<8x32xf32>
    %183 = arith.addf %182, %181 : vector<8x32xf32>
    %184 = arith.divf %182, %183 : vector<8x32xf32>
    %185 = arith.mulf %176, %149 : vector<8x32xf32>
    %186 = arith.mulf %170, %178 : vector<8x32xf32>
    %187 = arith.addf %185, %186 : vector<8x32xf32>
    %188 = math.tanh %187 : vector<8x32xf32>
    %189 = arith.mulf %184, %188 : vector<8x32xf32>
    %c0_59 = arith.constant 0 : index
    %190 = arith.index_cast %158 : i32 to index
    %c0_60 = arith.constant 0 : index
    %c0_61 = arith.constant 0 : index
    %191 = vector.load %arg3[%c0_59, %190, %c0_60, %c0_61] : memref<1x8x8x32xf32, #tpu.memory_space<vmem>>, vector<1x1x8x32xf32>
    %192 = vector.shape_cast %191 : vector<1x1x8x32xf32> to vector<8x32xf32>
    %193 = vector.shape_cast %189 : vector<8x32xf32> to vector<1x1x8x32xf32>
    tpu.vector_store %arg3[%c0_59, %190, %c0_60, %c0_61], %193 {strides = array<i32>} : memref<1x8x8x32xf32, #tpu.memory_space<vmem>>, vector<1x1x8x32xf32>,
    %c5_i32 = arith.constant 5 : i32
    %c0_i32_62 = arith.constant 0 : i32
    %194 = arith.cmpi eq, %arg0, %c0_i32_62 : i32
    %c7_i32_63 = arith.constant 7 : i32
    %195 = arith.subi %c7_i32_63, %c5_i32 : i32
    %196 = arith.select %194, %c5_i32, %195 : i32
    %c0_64 = arith.constant 0 : index
    %197 = arith.index_cast %196 : i32 to index
    %c0_65 = arith.constant 0 : index
    %c0_66 = arith.constant 0 : index
    %198 = vector.load %arg1[%c0_64, %197, %c0_65, %c0_66] : memref<1x8x8x128xf32, #tpu.memory_space<vmem>>, vector<1x1x8x128xf32>
    %199 = vector.shape_cast %198 : vector<1x1x8x128xf32> to vector<8x128xf32>
    %200 = arith.truncf %189 : vector<8x32xf32> to vector<8x32xbf16>
    %cst_67 = arith.constant dense<0.000000e+00> : vector<8x128xf32>
    %201 = tpu.matmul %200, %1, %cst_67 {dimension_numbers = #tpu.dot_dimension_numbers<[1], [0], [0], [1], [0, 0, 1, 1], [], []>} : vector<8x32xbf16>, vector<32x128xbf16>, vector<8x128xf32> -> vector<8x128xf32>
    %202 = arith.addf %199, %201 : vector<8x128xf32>
    %203 = vector.extract_strided_slice %202 {offsets = [0, 0], sizes = [8, 32], strides = [1, 1]} : vector<8x128xf32> to vector<8x32xf32>
    %204 = arith.negf %203 : vector<8x32xf32>
    %205 = math.exp %204 : vector<8x32xf32>
    %cst_68 = arith.constant 1.000000e+00 : f32
    %206 = vector.broadcast %cst_68 : f32 to vector<8x32xf32>
    %207 = arith.addf %206, %205 : vector<8x32xf32>
    %208 = arith.divf %206, %207 : vector<8x32xf32>
    %209 = vector.extract_strided_slice %202 {offsets = [0, 32], sizes = [8, 32], strides = [1, 1]} : vector<8x128xf32> to vector<8x32xf32>
    %210 = arith.negf %209 : vector<8x32xf32>
    %211 = math.exp %210 : vector<8x32xf32>
    %cst_69 = arith.constant 1.000000e+00 : f32
    %212 = vector.broadcast %cst_69 : f32 to vector<8x32xf32>
    %213 = arith.addf %212, %211 : vector<8x32xf32>
    %214 = arith.divf %212, %213 : vector<8x32xf32>
    %215 = vector.extract_strided_slice %202 {offsets = [0, 64], sizes = [8, 32], strides = [1, 1]} : vector<8x128xf32> to vector<8x32xf32>
    %216 = math.tanh %215 : vector<8x32xf32>
    %217 = vector.extract_strided_slice %202 {offsets = [0, 96], sizes = [8, 32], strides = [1, 1]} : vector<8x128xf32> to vector<8x32xf32>
    %218 = arith.negf %217 : vector<8x32xf32>
    %219 = math.exp %218 : vector<8x32xf32>
    %cst_70 = arith.constant 1.000000e+00 : f32
    %220 = vector.broadcast %cst_70 : f32 to vector<8x32xf32>
    %221 = arith.addf %220, %219 : vector<8x32xf32>
    %222 = arith.divf %220, %221 : vector<8x32xf32>
    %223 = arith.mulf %214, %187 : vector<8x32xf32>
    %224 = arith.mulf %208, %216 : vector<8x32xf32>
    %225 = arith.addf %223, %224 : vector<8x32xf32>
    %226 = math.tanh %225 : vector<8x32xf32>
    %227 = arith.mulf %222, %226 : vector<8x32xf32>
    %c0_71 = arith.constant 0 : index
    %228 = arith.index_cast %196 : i32 to index
    %c0_72 = arith.constant 0 : index
    %c0_73 = arith.constant 0 : index
    %229 = vector.load %arg3[%c0_71, %228, %c0_72, %c0_73] : memref<1x8x8x32xf32, #tpu.memory_space<vmem>>, vector<1x1x8x32xf32>
    %230 = vector.shape_cast %229 : vector<1x1x8x32xf32> to vector<8x32xf32>
    %231 = vector.shape_cast %227 : vector<8x32xf32> to vector<1x1x8x32xf32>
    tpu.vector_store %arg3[%c0_71, %228, %c0_72, %c0_73], %231 {strides = array<i32>} : memref<1x8x8x32xf32, #tpu.memory_space<vmem>>, vector<1x1x8x32xf32>,
    %c6_i32 = arith.constant 6 : i32
    %c0_i32_74 = arith.constant 0 : i32
    %232 = arith.cmpi eq, %arg0, %c0_i32_74 : i32
    %c7_i32_75 = arith.constant 7 : i32
    %233 = arith.subi %c7_i32_75, %c6_i32 : i32
    %234 = arith.select %232, %c6_i32, %233 : i32
    %c0_76 = arith.constant 0 : index
    %235 = arith.index_cast %234 : i32 to index
    %c0_77 = arith.constant 0 : index
    %c0_78 = arith.constant 0 : index
    %236 = vector.load %arg1[%c0_76, %235, %c0_77, %c0_78] : memref<1x8x8x128xf32, #tpu.memory_space<vmem>>, vector<1x1x8x128xf32>
    %237 = vector.shape_cast %236 : vector<1x1x8x128xf32> to vector<8x128xf32>
    %238 = arith.truncf %227 : vector<8x32xf32> to vector<8x32xbf16>
    %cst_79 = arith.constant dense<0.000000e+00> : vector<8x128xf32>
    %239 = tpu.matmul %238, %1, %cst_79 {dimension_numbers = #tpu.dot_dimension_numbers<[1], [0], [0], [1], [0, 0, 1, 1], [], []>} : vector<8x32xbf16>, vector<32x128xbf16>, vector<8x128xf32> -> vector<8x128xf32>
    %240 = arith.addf %237, %239 : vector<8x128xf32>
    %241 = vector.extract_strided_slice %240 {offsets = [0, 0], sizes = [8, 32], strides = [1, 1]} : vector<8x128xf32> to vector<8x32xf32>
    %242 = arith.negf %241 : vector<8x32xf32>
    %243 = math.exp %242 : vector<8x32xf32>
    %cst_80 = arith.constant 1.000000e+00 : f32
    %244 = vector.broadcast %cst_80 : f32 to vector<8x32xf32>
    %245 = arith.addf %244, %243 : vector<8x32xf32>
    %246 = arith.divf %244, %245 : vector<8x32xf32>
    %247 = vector.extract_strided_slice %240 {offsets = [0, 32], sizes = [8, 32], strides = [1, 1]} : vector<8x128xf32> to vector<8x32xf32>
    %248 = arith.negf %247 : vector<8x32xf32>
    %249 = math.exp %248 : vector<8x32xf32>
    %cst_81 = arith.constant 1.000000e+00 : f32
    %250 = vector.broadcast %cst_81 : f32 to vector<8x32xf32>
    %251 = arith.addf %250, %249 : vector<8x32xf32>
    %252 = arith.divf %250, %251 : vector<8x32xf32>
    %253 = vector.extract_strided_slice %240 {offsets = [0, 64], sizes = [8, 32], strides = [1, 1]} : vector<8x128xf32> to vector<8x32xf32>
    %254 = math.tanh %253 : vector<8x32xf32>
    %255 = vector.extract_strided_slice %240 {offsets = [0, 96], sizes = [8, 32], strides = [1, 1]} : vector<8x128xf32> to vector<8x32xf32>
    %256 = arith.negf %255 : vector<8x32xf32>
    %257 = math.exp %256 : vector<8x32xf32>
    %cst_82 = arith.constant 1.000000e+00 : f32
    %258 = vector.broadcast %cst_82 : f32 to vector<8x32xf32>
    %259 = arith.addf %258, %257 : vector<8x32xf32>
    %260 = arith.divf %258, %259 : vector<8x32xf32>
    %261 = arith.mulf %252, %225 : vector<8x32xf32>
    %262 = arith.mulf %246, %254 : vector<8x32xf32>
    %263 = arith.addf %261, %262 : vector<8x32xf32>
    %264 = math.tanh %263 : vector<8x32xf32>
    %265 = arith.mulf %260, %264 : vector<8x32xf32>
    %c0_83 = arith.constant 0 : index
    %266 = arith.index_cast %234 : i32 to index
    %c0_84 = arith.constant 0 : index
    %c0_85 = arith.constant 0 : index
    %267 = vector.load %arg3[%c0_83, %266, %c0_84, %c0_85] : memref<1x8x8x32xf32, #tpu.memory_space<vmem>>, vector<1x1x8x32xf32>
    %268 = vector.shape_cast %267 : vector<1x1x8x32xf32> to vector<8x32xf32>
    %269 = vector.shape_cast %265 : vector<8x32xf32> to vector<1x1x8x32xf32>
    tpu.vector_store %arg3[%c0_83, %266, %c0_84, %c0_85], %269 {strides = array<i32>} : memref<1x8x8x32xf32, #tpu.memory_space<vmem>>, vector<1x1x8x32xf32>,
    %c7_i32_86 = arith.constant 7 : i32
    %c0_i32_87 = arith.constant 0 : i32
    %270 = arith.cmpi eq, %arg0, %c0_i32_87 : i32
    %c7_i32_88 = arith.constant 7 : i32
    %271 = arith.subi %c7_i32_88, %c7_i32_86 : i32
    %272 = arith.select %270, %c7_i32_86, %271 : i32
    %c0_89 = arith.constant 0 : index
    %273 = arith.index_cast %272 : i32 to index
    %c0_90 = arith.constant 0 : index
    %c0_91 = arith.constant 0 : index
    %274 = vector.load %arg1[%c0_89, %273, %c0_90, %c0_91] : memref<1x8x8x128xf32, #tpu.memory_space<vmem>>, vector<1x1x8x128xf32>
    %275 = vector.shape_cast %274 : vector<1x1x8x128xf32> to vector<8x128xf32>
    %276 = arith.truncf %265 : vector<8x32xf32> to vector<8x32xbf16>
    %cst_92 = arith.constant dense<0.000000e+00> : vector<8x128xf32>
    %277 = tpu.matmul %276, %1, %cst_92 {dimension_numbers = #tpu.dot_dimension_numbers<[1], [0], [0], [1], [0, 0, 1, 1], [], []>} : vector<8x32xbf16>, vector<32x128xbf16>, vector<8x128xf32> -> vector<8x128xf32>
    %278 = arith.addf %275, %277 : vector<8x128xf32>
    %279 = vector.extract_strided_slice %278 {offsets = [0, 0], sizes = [8, 32], strides = [1, 1]} : vector<8x128xf32> to vector<8x32xf32>
    %280 = arith.negf %279 : vector<8x32xf32>
    %281 = math.exp %280 : vector<8x32xf32>
    %cst_93 = arith.constant 1.000000e+00 : f32
    %282 = vector.broadcast %cst_93 : f32 to vector<8x32xf32>
    %283 = arith.addf %282, %281 : vector<8x32xf32>
    %284 = arith.divf %282, %283 : vector<8x32xf32>
    %285 = vector.extract_strided_slice %278 {offsets = [0, 32], sizes = [8, 32], strides = [1, 1]} : vector<8x128xf32> to vector<8x32xf32>
    %286 = arith.negf %285 : vector<8x32xf32>
    %287 = math.exp %286 : vector<8x32xf32>
    %cst_94 = arith.constant 1.000000e+00 : f32
    %288 = vector.broadcast %cst_94 : f32 to vector<8x32xf32>
    %289 = arith.addf %288, %287 : vector<8x32xf32>
    %290 = arith.divf %288, %289 : vector<8x32xf32>
    %291 = vector.extract_strided_slice %278 {offsets = [0, 64], sizes = [8, 32], strides = [1, 1]} : vector<8x128xf32> to vector<8x32xf32>
    %292 = math.tanh %291 : vector<8x32xf32>
    %293 = vector.extract_strided_slice %278 {offsets = [0, 96], sizes = [8, 32], strides = [1, 1]} : vector<8x128xf32> to vector<8x32xf32>
    %294 = arith.negf %293 : vector<8x32xf32>
    %295 = math.exp %294 : vector<8x32xf32>
    %cst_95 = arith.constant 1.000000e+00 : f32
    %296 = vector.broadcast %cst_95 : f32 to vector<8x32xf32>
    %297 = arith.addf %296, %295 : vector<8x32xf32>
    %298 = arith.divf %296, %297 : vector<8x32xf32>
    %299 = arith.mulf %290, %263 : vector<8x32xf32>
    %300 = arith.mulf %284, %292 : vector<8x32xf32>
    %301 = arith.addf %299, %300 : vector<8x32xf32>
    %302 = math.tanh %301 : vector<8x32xf32>
    %303 = arith.mulf %298, %302 : vector<8x32xf32>
    %c0_96 = arith.constant 0 : index
    %304 = arith.index_cast %272 : i32 to index
    %c0_97 = arith.constant 0 : index
    %c0_98 = arith.constant 0 : index
    %305 = vector.load %arg3[%c0_96, %304, %c0_97, %c0_98] : memref<1x8x8x32xf32, #tpu.memory_space<vmem>>, vector<1x1x8x32xf32>
    %306 = vector.shape_cast %305 : vector<1x1x8x32xf32> to vector<8x32xf32>
    %307 = vector.shape_cast %303 : vector<8x32xf32> to vector<1x1x8x32xf32>
    tpu.vector_store %arg3[%c0_96, %304, %c0_97, %c0_98], %307 {strides = array<i32>} : memref<1x8x8x32xf32, #tpu.memory_space<vmem>>, vector<1x1x8x32xf32>,
    %c8_i32 = arith.constant 8 : i32
    return
  }
  func.func @transform_0(%arg0: i32) -> (i32, i32, i32, i32) {
    %c0_i32 = arith.constant 0 : i32
    %c0_i32_0 = arith.constant 0 : i32
    %c0_i32_1 = arith.constant 0 : i32
    %c0_i32_2 = arith.constant 0 : i32
    return %arg0, %c0_i32, %c0_i32_0, %c0_i32_1 : i32, i32, i32, i32
  }
  func.func @transform_1(%arg0: i32) -> (i32, i32, i32) {
    %c0_i32 = arith.constant 0 : i32
    %c0_i32_0 = arith.constant 0 : i32
    %c0_i32_1 = arith.constant 0 : i32
    return %arg0, %c0_i32, %c0_i32_0 : i32, i32, i32
  }
  func.func @transform_2(%arg0: i32) -> (i32, i32, i32, i32) {
    %c0_i32 = arith.constant 0 : i32
    %c0_i32_0 = arith.constant 0 : i32
    %c0_i32_1 = arith.constant 0 : i32
    %c0_i32_2 = arith.constant 0 : i32
    return %arg0, %c0_i32, %c0_i32_0, %c0_i32_1 : i32, i32, i32, i32
  }
}

</mosaic_0001>

<llo_original>
// kernel: lstm_classifier_forward.9
$region0: #{lstm_classifier_forward.9}
  #allocation0 [shape = 'u32[]', space=smem, size = 0x4, offset = 0x4, fixed_abs, tag = 'smem constant byte address 0x4 - core index']
  #allocation1 [shape = 'u32[144,128]{1,0:T(1,128)}', space=vmem, size = 0x12000, scoped, tag = 'internal scratch']
  #allocation2 [shape = 'f32[1,1]{1,0:T(1,128)S(1)}', space=vmem, size = 0x200, scoped, tag = 'scoped memory for lstm_classifier_forward.9']
  %s0 = inlined_call_operand.vmem [shape: f32[2,8,8,32], index: 0, kind: input, shape index: {}]
  %s1 = inlined_call_operand.vmem [shape: f32[2,1,32], index: 1, kind: input, shape index: {}]
  %s2 = inlined_call_operand.<no memory space> [shape: f32[1,1], index: 2, kind: input, shape index: {}]
  %s3 = inlined_call_operand.vmem [shape: f32[8,1], index: 3, kind: output, shape index: {}]
  %s4 = sld [smem:[#allocation0]]
  $region60: #{lstm_classifier_forward.9} parent=0
    _
  %s6 = ssub.s32 1, %s4
  %s7 = scalar_select 0, %s6, %s4
  %v8 = vstv %s2
  %9 = vst [vmem:[#allocation2] sm:$0x1] %v8
  $region1: #{lstm_classifier_forward.9} parent=0
    #allocation3 [shape = 'u8[8192]{0}', space=vmem, size = 0x2000, scoped, tag = 'input window, operand 0, single buffered']
    // Predicated region
    $region2: #{lstm_classifier_forward.9} parent=1 // pred_check
      _
    $region3: #{lstm_classifier_forward.9} parent=1 // pred_check_branch
      %11 = sbr.rel (0) target = $region5
    $region4: #{lstm_classifier_forward.9} parent=1 // pred_region
      %s12 = scalar_lea.vmem %s0, 56
      // Predicated region
      $region6: #{lstm_classifier_forward.9} parent=4 // pred_check
        _
      $region7: #{lstm_classifier_forward.9} parent=4 // pred_check_branch
        %14 = sbr.rel (0) target = $region9
      $region8: #{lstm_classifier_forward.9} parent=4 // pred_region
        // Predicated region
        $region10: #{lstm_classifier_forward.9} parent=8 // pred_check
          _
        $region11: #{lstm_classifier_forward.9} parent=8 // pred_check_branch
          %16 = sbr.rel (0) target = $region13
        $region12: #{lstm_classifier_forward.9} parent=8 // pred_region
          // Predicated region
          $region25: #{lstm_classifier_forward.9} parent=12 // pred_check
            _
          $region26: #{lstm_classifier_forward.9} parent=12 // pred_check_branch
            %33 = sbr.rel (0) target = $region28
          $region27: #{lstm_classifier_forward.9} parent=12 // pred_region
            loop: start=0, step=1, limit=1
            $region29: #{lstm_classifier_forward.9} parent=27 // loop_pre_header
              _
            $region30: #{lstm_classifier_forward.9} parent=27 // loop_header
              %s35 = sphi 0, %s39
              %p36 = scmp.ge.s32.totalorder %s35, 1
              %s40 = sphi %s12, %s12
              %s41 = sphi [#allocation3], [#allocation3]
            $region31: #{lstm_classifier_forward.9} parent=27 // loop_header_branch
              %38 = sbr.rel (%p36) target = $region35
            $region32: #{lstm_classifier_forward.9} parent=27 // loop_body
              %v42 = vld [vmem:[%s40] sm:$0xff]
              %43 = vst [vmem:[%s41] sm:$0xff] %v42
              %v44 = vld [vmem:[%s40 + $0x40] sm:$0xff]
              %45 = vst [vmem:[%s41 + $0x8] sm:$0xff] %v44
            $region33: #{lstm_classifier_forward.9} parent=27 // loop_footer
              %s39 = sadd.s32 1, %s35
            $region34: #{lstm_classifier_forward.9} parent=27 // loop_footer_branch
              %34 = sbr.rel target = $region30
            $region35: #{lstm_classifier_forward.9} parent=27 // loop_exit
              _
          $region28: #{lstm_classifier_forward.9} parent=12 // pred_fallthru
            _
          // Predicated region
          $region36: #{lstm_classifier_forward.9} parent=12 // pred_check
            _
          $region37: #{lstm_classifier_forward.9} parent=12 // pred_check_branch
            %47 = sbr.rel target = $region39
          $region38: #{lstm_classifier_forward.9} parent=12 // pred_region
            _
          $region39: #{lstm_classifier_forward.9} parent=12 // pred_fallthru
            _
        $region13: #{lstm_classifier_forward.9} parent=8 // pred_fallthru
          _
        // Predicated region
        $region14: #{lstm_classifier_forward.9} parent=8 // pred_check
          _
        $region15: #{lstm_classifier_forward.9} parent=8 // pred_check_branch
          %18 = sbr.rel target = $region17
        $region16: #{lstm_classifier_forward.9} parent=8 // pred_region
          loop: start=0, step=1, limit=1
          $region18: #{lstm_classifier_forward.9} parent=16 // loop_pre_header
            _
          $region19: #{lstm_classifier_forward.9} parent=16 // loop_header
            %s21 = sphi 0, %s25
            %p22 = scmp.ge.s32.totalorder %s21, 1
            %s26 = sphi %s12, %s12
            %s27 = sphi [#allocation3], [#allocation3]
          $region20: #{lstm_classifier_forward.9} parent=16 // loop_header_branch
            %24 = sbr.rel (%p22) target = $region24
          $region21: #{lstm_classifier_forward.9} parent=16 // loop_body
            %v28 = vld [vmem:[%s26] sm:$0xff]
            %29 = vst [vmem:[%s27] sm:$0xff] %v28
            %v30 = vld [vmem:[%s26 + $0x40] sm:$0xff]
            %31 = vst [vmem:[%s27 + $0x8] sm:$0xff] %v30
          $region22: #{lstm_classifier_forward.9} parent=16 // loop_footer
            %s25 = sadd.s32 1, %s21
          $region23: #{lstm_classifier_forward.9} parent=16 // loop_footer_branch
            %20 = sbr.rel target = $region19
          $region24: #{lstm_classifier_forward.9} parent=16 // loop_exit
            _
        $region17: #{lstm_classifier_forward.9} parent=8 // pred_fallthru
          _
      $region9: #{lstm_classifier_forward.9} parent=4 // pred_fallthru
        _
      %48 = vnop
    $region5: #{lstm_classifier_forward.9} parent=1 // pred_fallthru
      _
    // Predicated region
    $region40: #{lstm_classifier_forward.9} parent=1 // pred_check
      _
    $region41: #{lstm_classifier_forward.9} parent=1 // pred_check_branch
      %50 = sbr.rel (0) target = $region43
    $region42: #{lstm_classifier_forward.9} parent=1 // pred_region
      _
    $region43: #{lstm_classifier_forward.9} parent=1 // pred_fallthru
      _
    // Predicated region
    $region44: #{lstm_classifier_forward.9} parent=1 // pred_check
      _
    $region45: #{lstm_classifier_forward.9} parent=1 // pred_check_branch
      %52 = sbr.rel (0) target = $region47
    $region46: #{lstm_classifier_forward.9} parent=1 // pred_region
      _
    $region47: #{lstm_classifier_forward.9} parent=1 // pred_fallthru
      _
    // Predicated region
    $region48: #{lstm_classifier_forward.9} parent=1 // pred_check
      _
    $region49: #{lstm_classifier_forward.9} parent=1 // pred_check_branch
      %54 = sbr.rel (0) target = $region51
    $region50: #{lstm_classifier_forward.9} parent=1 // pred_region
      _
    $region51: #{lstm_classifier_forward.9} parent=1 // pred_fallthru
      _
    %v55 = vld [vmem:[#allocation3] sm:$0xff]
    %v56 = vld [vmem:[%s1] sm:$0x1]
    %v58 = vlaneseq
    %v59 = vshrl.u32 %v58, 7
    %v60 = vsub.s32 0, %v59
    %v61 = vrot.slane %v56, %v60
    %v63 = vmul.f32 %v55, %v61
    %vm64 = vcmask 261120
    %v65 = vsel %vm64, %v63, 0.0
    %66 = vadd.xlane.f32.xlu0 %v65
    %v67 = vpop.xlane.xlu0 %66
    %s68 = scalar_lea.vmem [#allocation3], 8
    %v69 = vld [vmem:[%s68] sm:$0xff]
    %s70 = scalar_lea.vmem %s1, 1
    %v71 = vld [vmem:[%s70] sm:$0x1]
    %v73 = vlaneseq
    %v74 = vshrl.u32 %v73, 7
    %v75 = vsub.s32 0, %v74
    %v76 = vrot.slane %v71, %v75
    %v78 = vmul.f32 %v69, %v76
    %v79 = vsel %vm64, %v78, 0.0
    %80 = vadd.xlane.f32.xlu0 %v79
    %v81 = vpop.xlane.xlu0 %80
    %v82 = vadd.f32 %v67, %v81
    %v83 = vld [vmem:[#allocation2] sm:$0x1]
    %v85 = vlaneseq
    %v86 = vshrl.u32 %v85, 7
    %v87 = vsub.s32 0, %v86
    %v88 = vrot.slane %v83, %v87
    %v90 = vadd.f32 %v82, %v88
    %v91 = vxor.u32 %v90, 2147483648
    %v92 = vmul.f32 %v91, 1.442695
    %v93 = vpow.pop %v92
    %v94 = vadd.f32 %v93, 1.0
    %v95 = vrcp.pop %v94
    %v96 = vmul.f32 1.0, %v95
    %vm97 = vcmask 7168
    %98 = vst.msk [vmem:[%s3] sm:$0xff] %vm97, %v96
    // Predicated region
    $region52: #{lstm_classifier_forward.9} parent=1 // pred_check
      _
    $region53: #{lstm_classifier_forward.9} parent=1 // pred_check_branch
      %100 = sbr.rel (0) target = $region55
    $region54: #{lstm_classifier_forward.9} parent=1 // pred_region
      _
    $region55: #{lstm_classifier_forward.9} parent=1 // pred_fallthru
      _
    // Predicated region
    $region56: #{lstm_classifier_forward.9} parent=1 // pred_check
      _
    $region57: #{lstm_classifier_forward.9} parent=1 // pred_check_branch
      %102 = sbr.rel (0) target = $region59
    $region58: #{lstm_classifier_forward.9} parent=1 // pred_region
      _
    $region59: #{lstm_classifier_forward.9} parent=1 // pred_fallthru
      _

// kernel: lstm_classifier_forward.5
$region0: #{lstm_classifier_forward.5}
  #allocation0 [shape = 'u32[]', space=smem, size = 0x4, offset = 0x4, fixed_abs, tag = 'smem constant byte address 0x4 - core index']
  #allocation1 [shape = 'u32[144,128]{1,0:T(1,128)}', space=vmem, size = 0x12000, scoped, tag = 'internal scratch']
  %s0 = inlined_call_operand.vmem [shape: f32[8,8,32], index: 0, kind: input, shape index: {}]
  %s1 = inlined_call_operand.vmem [shape: bf16[2,32,128], index: 1, kind: input, shape index: {}]
  %s2 = inlined_call_operand.vmem [shape: f32[2,1,128], index: 2, kind: input, shape index: {}]
  %s3 = inlined_call_operand.vmem [shape: f32[2,8,8,128], index: 3, kind: output, shape index: {}]
  %s4 = sld [smem:[#allocation0]]
  $region45: #{lstm_classifier_forward.5} parent=0
    _
  %s6 = ssub.s32 1, %s4
  %s7 = scalar_select 0, %s6, %s4
  loop: start=0, step=1, limit=4
  $region2: #{lstm_classifier_forward.5} parent=0 // loop_pre_header
    _
  $region3: #{lstm_classifier_forward.5} parent=0 // loop_header
    %s9 = sphi 0, %s13
    %p10 = scmp.ge.s32.totalorder %s9, 4
    %s17 = sphi 0, %s17
    %s19 = sphi 0, %s17
    %s20 = sphi 0, %s19
    %s34 = sphi 0, %s20
    %s40 = sphi 0, %s42
    %s43 = sphi 0, %s40
    %s44 = sphi 0, %s43
    %s60 = sphi 0, %s44
    %s66 = sphi 0, %s68
    %s69 = sphi 0, %s66
    %s70 = sphi 0, %s69
    %s86 = sphi 0, %s70
    %s92 = sphi 0, %s94
    %s95 = sphi 0, %s92
    %s96 = sphi 0, %s95
    %s112 = sphi 0, %s96
  $region4: #{lstm_classifier_forward.5} parent=0 // loop_header_branch
    %12 = sbr.rel (%p10) target = $region8
  $region5: #{lstm_classifier_forward.5} parent=0 // loop_body
    %s14 = ssub.s32 %s9, 1
    %s15 = ssub.s32 %s9, 2
    %s16 = sadd.s32 %s9, 1
    %s18 = sadd.s32 %s17, 1
    %p21 = scmp.eq.s32.totalorder %s9, 1
    %p22 = scmp.ne.s32.totalorder %s17, %s19
    %p23 = scmp.eq.s32.totalorder %s9, 0
    %p24 = por %p22, %p23
    %p25 = scmp.ne.s32.totalorder %s17, %s19
    %p26 = scmp.eq.s32.totalorder %s14, 1
    %p27 = por %p25, %p26
    %p28 = scmp.ne.s32.totalorder %s19, %s20
    %p29 = scmp.eq.s32.totalorder %s14, 0
    %p30 = por %p28, %p29
    %p31 = scmp.ne.s32.totalorder %s19, %s20
    %p32 = scmp.eq.s32.totalorder %s15, 1
    %p33 = por %p31, %p32
    %p35 = scmp.ne.s32.totalorder %s20, %s34
    %p36 = scmp.eq.s32.totalorder %s15, 0
    %p37 = por %p35, %p36
    %s38 = ssub.s32 %s9, %s16
    %p39 = scmp.eq.s32.totalorder %s38, 0
    %s41 = sadd.s32 %s40, 1
    %s42 = scalar_select %p39, %s40, %s41
    %p45 = pneg %p39
    %p46 = scmp.eq.s32.totalorder %s9, 1
    %p47 = por %p45, %p46
    %p48 = scmp.ne.s32.totalorder %s40, %s43
    %p49 = scmp.eq.s32.totalorder %s9, 0
    %p50 = por %p48, %p49
    %p51 = scmp.ne.s32.totalorder %s40, %s43
    %p52 = scmp.eq.s32.totalorder %s14, 1
    %p53 = por %p51, %p52
    %p54 = scmp.ne.s32.totalorder %s43, %s44
    %p55 = scmp.eq.s32.totalorder %s14, 0
    %p56 = por %p54, %p55
    %p57 = scmp.ne.s32.totalorder %s43, %s44
    %p58 = scmp.eq.s32.totalorder %s15, 1
    %p59 = por %p57, %p58
    %p61 = scmp.ne.s32.totalorder %s44, %s60
    %p62 = scmp.eq.s32.totalorder %s15, 0
    %p63 = por %p61, %p62
    %s64 = ssub.s32 %s9, %s16
    %p65 = scmp.eq.s32.totalorder %s64, 0
    %s67 = sadd.s32 %s66, 1
    %s68 = scalar_select %p65, %s66, %s67
    %p71 = pneg %p65
    %p72 = scmp.eq.s32.totalorder %s9, 1
    %p73 = por %p71, %p72
    %p74 = scmp.ne.s32.totalorder %s66, %s69
    %p75 = scmp.eq.s32.totalorder %s9, 0
    %p76 = por %p74, %p75
    %p77 = scmp.ne.s32.totalorder %s66, %s69
    %p78 = scmp.eq.s32.totalorder %s14, 1
    %p79 = por %p77, %p78
    %p80 = scmp.ne.s32.totalorder %s69, %s70
    %p81 = scmp.eq.s32.totalorder %s14, 0
    %p82 = por %p80, %p81
    %p83 = scmp.ne.s32.totalorder %s69, %s70
    %p84 = scmp.eq.s32.totalorder %s15, 1
    %p85 = por %p83, %p84
    %p87 = scmp.ne.s32.totalorder %s70, %s86
    %p88 = scmp.eq.s32.totalorder %s15, 0
    %p89 = por %p87, %p88
    %s90 = ssub.s32 %s9, %s16
    %p91 = scmp.eq.s32.totalorder %s90, 0
    %s93 = sadd.s32 %s92, 1
    %s94 = scalar_select %p91, %s92, %s93
    %p97 = pneg %p91
    %p98 = scmp.eq.s32.totalorder %s9, 1
    %p99 = por %p97, %p98
    %p100 = scmp.ne.s32.totalorder %s92, %s95
    %p101 = scmp.eq.s32.totalorder %s9, 0
    %p102 = por %p100, %p101
    %p103 = scmp.ne.s32.totalorder %s92, %s95
    %p104 = scmp.eq.s32.totalorder %s14, 1
    %p105 = por %p103, %p104
    %p106 = scmp.ne.s32.totalorder %s95, %s96
    %p107 = scmp.eq.s32.totalorder %s14, 0
    %p108 = por %p106, %p107
    %p109 = scmp.ne.s32.totalorder %s95, %s96
    %p110 = scmp.eq.s32.totalorder %s15, 1
    %p111 = por %p109, %p110
    %p113 = scmp.ne.s32.totalorder %s96, %s112
    %p114 = scmp.eq.s32.totalorder %s15, 0
    %p115 = por %p113, %p114
    %p116 = scmp.le.s32.totalorder 1, %s9
    %p117 = scmp.lt.s32.totalorder %s9, 3
    %p118 = pnand %p116, %p117
    %p119 = pneg %p118
    // Predicated region
    $region9: #{lstm_classifier_forward.5} parent=5 // pred_check
      _
    $region10: #{lstm_classifier_forward.5} parent=5 // pred_check_branch
      %121 = sbr.rel (%p118) target = $region12
    $region11: #{lstm_classifier_forward.5} parent=5 // pred_region
      %s122 = ssub.s32 %s9, 1
      // Predicated region
      $region13: #{lstm_classifier_forward.5} parent=11 // pred_check
        %p123 = pneg %p30
      $region14: #{lstm_classifier_forward.5} parent=11 // pred_check_branch
        %125 = sbr.rel (%p123) target = $region16
      $region15: #{lstm_classifier_forward.5} parent=11 // pred_region
        _
      $region16: #{lstm_classifier_forward.5} parent=11 // pred_fallthru
        _
    $region12: #{lstm_classifier_forward.5} parent=5 // pred_fallthru
      _
    %p126 = scmp.lt.s32.totalorder %s9, 2
    // Predicated region
    $region17: #{lstm_classifier_forward.5} parent=5 // pred_check
      %p127 = pneg %p126
    $region18: #{lstm_classifier_forward.5} parent=5 // pred_check_branch
      %129 = sbr.rel (%p127) target = $region20
    $region19: #{lstm_classifier_forward.5} parent=5 // pred_region
      // Predicated region
      $region21: #{lstm_classifier_forward.5} parent=19 // pred_check
        %p130 = pneg %p50
      $region22: #{lstm_classifier_forward.5} parent=19 // pred_check_branch
        %132 = sbr.rel (%p130) target = $region24
      $region23: #{lstm_classifier_forward.5} parent=19 // pred_region
        %p133 = scmp.lt.s32.totalorder %s9, 1
        %s134 = scalar_select %p133, %s9, 1
        %s135 = smul.addr %s134, 4
        %s136 = smul.addr %s135, 4
        %s137 = scalar_lea.vmem %s1, %s136
      $region24: #{lstm_classifier_forward.5} parent=19 // pred_fallthru
        _
      // Predicated region
      $region25: #{lstm_classifier_forward.5} parent=19 // pred_check
        %p138 = pneg %p76
      $region26: #{lstm_classifier_forward.5} parent=19 // pred_check_branch
        %140 = sbr.rel (%p138) target = $region28
      $region27: #{lstm_classifier_forward.5} parent=19 // pred_region
        %p141 = scmp.lt.s32.totalorder %s9, 1
        %s142 = scalar_select %p141, %s9, 1
        %s143 = scalar_lea.vmem %s2, %s142
      $region28: #{lstm_classifier_forward.5} parent=19 // pred_fallthru
        _
    $region20: #{lstm_classifier_forward.5} parent=5 // pred_fallthru
      _
    %p144 = scmp.le.s32.totalorder 1, %s9
    %p145 = scmp.lt.s32.totalorder %s9, 3
    %p146 = pnand %p144, %p145
    %p147 = pneg %p146
    // Predicated region
    $region29: #{lstm_classifier_forward.5} parent=5 // pred_check
      _
    $region30: #{lstm_classifier_forward.5} parent=5 // pred_check_branch
      %149 = sbr.rel (%p146) target = $region32
    $region31: #{lstm_classifier_forward.5} parent=5 // pred_region
      %s150 = ssub.s32 %s9, 1
      %p151 = pneg %p30
      %p152 = pneg %p27
      %p153 = scmp.lt.s32.totalorder %s14, 1
      %s154 = scalar_select %p153, %s14, 1
      %s155 = smul.addr %s154, 4
      %s156 = smul.addr %s155, 4
      %s157 = scalar_lea.vmem %s1, %s156
      %p158 = pneg %p56
      %p159 = pneg %p53
      %p160 = scmp.lt.s32.totalorder %s14, 1
      %s161 = scalar_select %p160, %s14, 1
      %s162 = scalar_lea.vmem %s2, %s161
      %p163 = pneg %p82
      %p164 = pneg %p79
      %p165 = pneg %p108
      %p166 = pneg %p105
      %p167 = scmp.lt.s32.totalorder %s14, 1
      %s168 = scalar_select %p167, %s14, 1
      %s169 = smul.addr %s168, 8
      %s170 = smul.addr %s169, 8
      %s171 = scalar_lea.vmem %s3, %s170
      %p172 = scmp.lt.s32.totalorder %s14, 1
      %s173 = scalar_select %p172, %s14, 1
      %s174 = smul.addr %s173, 4
      %s175 = smul.addr %s174, 4
      %s176 = scalar_lea.vmem %s1, %s175
      %p177 = scmp.lt.s32.totalorder %s14, 1
      %s178 = scalar_select %p177, %s14, 1
      %s179 = scalar_lea.vmem %s2, %s178
      %p180 = scmp.lt.s32.totalorder %s14, 1
      %s181 = scalar_select %p180, %s14, 1
      %s182 = smul.addr %s181, 8
      %s183 = smul.addr %s182, 8
      %s184 = scalar_lea.vmem %s3, %s183
      %v186 = vld [vmem:[%s0] sm:$0xff]
      %v187 = vld [vmem:[%s0 + $0x8] sm:$0xff]
      %v188 = vld [vmem:[%s0 + $0x10] sm:$0xff]
      %v189 = vld [vmem:[%s0 + $0x18] sm:$0xff]
      %v190 = vld [vmem:[%s0 + $0x20] sm:$0xff]
      %v191 = vld [vmem:[%s0 + $0x28] sm:$0xff]
      %v192 = vld [vmem:[%s0 + $0x30] sm:$0xff]
      %v193 = vld [vmem:[%s0 + $0x38] sm:$0xff]
      %v194 = vpack.c.bf16 %v187, %v186
      %v195 = vpack.c.bf16 %v189, %v188
      %v196 = vpack.c.bf16 %v191, %v190
      %v197 = vpack.c.bf16 %v193, %v192
      %v198 = vld [vmem:[%s176] sm:$0xf]
      %v199 = vld [vmem:[%s176 + $0x4] sm:$0xf]
      %v200 = vld [vmem:[%s176 + $0x8] sm:$0xf]
      %v201 = vld [vmem:[%s176 + $0xc] sm:$0xf]
      %v202 = vld [vmem:[%s179] sm:$0x1]
      %v204 = vlaneseq
      %v205 = vshrl.u32 %v204, 7
      %v206 = vsub.s32 0, %v205
      %v207 = vrot.slane %v202, %v206
      %v213 = vunpack.c.l.b16 %v198
      %v214 = vunpack.c.l.b16 %v199
      %v215 = vunpack.c.l.b16 %v200
      %v216 = vunpack.c.l.b16 %v201
      %v217 = vpack.c.b16 %v214, %v213
      %v218 = vpack.c.b16 %v216, %v215
      %vm221 = vcmask 261120
      %v223 = vsel %vm221, %v194, 0
      %v226 = vsel %vm221, %v195, 0
      %v229 = vsel %vm221, %v196, 0
      %v232 = vsel %vm221, %v197, 0
      %234 = vmatprep.subr.bf16.mxu0 0
      %235 = vmatpush1.bf16.msra.mxu0 %v217
      %236 = vmatprep.subr.bf16.mxu0 0
      %237 = vmatpush1.bf16.msra.mxu0 %v218
      %238 = vmatprep.subr.bf16.mxu0 0
      %239 = vmatpush1.bf16.msra.mxu0 0
      %240 = vmatprep.subr.bf16.mxu0 0
      %241 = vmatpush1.bf16.msra.mxu0 0
      %242 = vmatprep.subr.bf16.mxu0 0
      %243 = vmatpush1.bf16.msra.mxu0 0
      %244 = vmatprep.subr.bf16.mxu0 0
      %245 = vmatpush1.bf16.msra.mxu0 0
      %246 = vmatprep.subr.bf16.mxu0 0
      %247 = vmatpush1.bf16.msra.mxu0 0
      %248 = vmatprep.subr.bf16.mxu0 0
      %249 = vmatpush1.bf16.msra.mxu0 0
      %250 = vmatprep.subr.bf16.mxu0 0
      %251 = vmatpush1.bf16.msra.mxu0 0
      %252 = vmatprep.subr.bf16.mxu0 0
      %253 = vmatpush1.bf16.msra.mxu0 0
      %254 = vmatprep.subr.bf16.mxu0 0
      %255 = vmatpush1.bf16.msra.mxu0 0
      %256 = vmatprep.subr.bf16.mxu0 0
      %257 = vmatpush1.bf16.msra.mxu0 0
      %258 = vmatprep.subr.bf16.mxu0 0
      %259 = vmatpush1.bf16.msra.mxu0 0
      %260 = vmatprep.subr.bf16.mxu0 0
      %261 = vmatpush1.bf16.msra.mxu0 0
      %262 = vmatprep.subr.bf16.mxu0 0
      %263 = vmatpush1.bf16.msra.mxu0 0
      %264 = vmatprep.subr.bf16.mxu0 0
      %265 = vmatpush1.bf16.msra.mxu0 0
      %266 = vmatprep.mubr.bf16.mxu0 0
      %267 = vmatmul.mubr.bf16.gmra.mrb[0].mxu0 %v223
      %v268 = vpop.f32.mrb[0].mxu0
      %v269 = vadd.f32 %v207, %v268
      %v270 = vpop.f32.mrb[0].mxu0
      %v271 = vpop.f32.mrb[0].mxu0
      %v272 = vadd.f32 %v207, %v271
      %v273 = vpop.f32.mrb[0].mxu0
      %274 = vmatprep.mubr.bf16.mxu0 0
      %275 = vmatmul.mubr.bf16.gmra.mrb[0].mxu0 %v226
      %v276 = vpop.f32.mrb[0].mxu0
      %v277 = vadd.f32 %v207, %v276
      %v278 = vpop.f32.mrb[0].mxu0
      %v279 = vpop.f32.mrb[0].mxu0
      %v280 = vadd.f32 %v207, %v279
      %v281 = vpop.f32.mrb[0].mxu0
      %282 = vmatprep.mubr.bf16.mxu0 0
      %283 = vmatmul.mubr.bf16.gmra.mrb[0].mxu0 %v229
      %v284 = vpop.f32.mrb[0].mxu0
      %v285 = vadd.f32 %v207, %v284
      %v286 = vpop.f32.mrb[0].mxu0
      %v287 = vpop.f32.mrb[0].mxu0
      %v288 = vadd.f32 %v207, %v287
      %v289 = vpop.f32.mrb[0].mxu0
      %290 = vmatprep.mubr.bf16.mxu0 0
      %291 = vmatmul.mubr.bf16.gmra.mrb[0].mxu0 %v232
      %v292 = vpop.f32.mrb[0].mxu0
      %v293 = vadd.f32 %v207, %v292
      %v294 = vpop.f32.mrb[0].mxu0
      %v295 = vpop.f32.mrb[0].mxu0
      %v296 = vadd.f32 %v207, %v295
      %v297 = vpop.f32.mrb[0].mxu0
      %298 = vdwg.mxu0
      %299 = vst [vmem:[%s184] sm:$0xff] %v269
      %300 = vst [vmem:[%s184 + $0x8] sm:$0xff] %v272
      %301 = vst [vmem:[%s184 + $0x10] sm:$0xff] %v277
      %302 = vst [vmem:[%s184 + $0x18] sm:$0xff] %v280
      %303 = vst [vmem:[%s184 + $0x20] sm:$0xff] %v285
      %304 = vst [vmem:[%s184 + $0x28] sm:$0xff] %v288
      %305 = vst [vmem:[%s184 + $0x30] sm:$0xff] %v293
      %306 = vst [vmem:[%s184 + $0x38] sm:$0xff] %v296
      %p307 = scmp.lt.s32.totalorder %s14, 1
      %s308 = scalar_select %p307, %s14, 1
      %s309 = smul.addr %s308, 8
      %s310 = smul.addr %s309, 8
      %s311 = scalar_lea.vmem %s3, %s310
      // Predicated region
      $region33: #{lstm_classifier_forward.5} parent=31 // pred_check
        %p312 = pneg %p105
      $region34: #{lstm_classifier_forward.5} parent=31 // pred_check_branch
        %314 = sbr.rel (%p312) target = $region36
      $region35: #{lstm_classifier_forward.5} parent=31 // pred_region
        _
      $region36: #{lstm_classifier_forward.5} parent=31 // pred_fallthru
        _
    $region32: #{lstm_classifier_forward.5} parent=5 // pred_fallthru
      _
    %p315 = scmp.le.s32.totalorder 2, %s9
    // Predicated region
    $region37: #{lstm_classifier_forward.5} parent=5 // pred_check
      %p316 = pneg %p315
    $region38: #{lstm_classifier_forward.5} parent=5 // pred_check_branch
      %318 = sbr.rel (%p316) target = $region40
    $region39: #{lstm_classifier_forward.5} parent=5 // pred_region
      %s319 = ssub.s32 %s9, 2
      // Predicated region
      $region41: #{lstm_classifier_forward.5} parent=39 // pred_check
        %p320 = pneg %p111
      $region42: #{lstm_classifier_forward.5} parent=39 // pred_check_branch
        %322 = sbr.rel (%p320) target = $region44
      $region43: #{lstm_classifier_forward.5} parent=39 // pred_region
        %p323 = scmp.lt.s32.totalorder %s15, 1
        %s324 = scalar_select %p323, %s15, 1
        %s325 = smul.addr %s324, 8
        %s326 = smul.addr %s325, 8
        %s327 = scalar_lea.vmem %s3, %s326
      $region44: #{lstm_classifier_forward.5} parent=39 // pred_fallthru
        _
    $region40: #{lstm_classifier_forward.5} parent=5 // pred_fallthru
      _
  $region6: #{lstm_classifier_forward.5} parent=0 // loop_footer
    %s13 = sadd.s32 1, %s9
  $region7: #{lstm_classifier_forward.5} parent=0 // loop_footer_branch
    %8 = sbr.rel target = $region3
  $region8: #{lstm_classifier_forward.5} parent=0 // loop_exit
    _

// kernel: lstm_classifier_forward.7
$region0: #{lstm_classifier_forward.7}
  #allocation0 [shape = 'u32[]', space=smem, size = 0x4, offset = 0x4, fixed_abs, tag = 'smem constant byte address 0x4 - core index']
  #allocation1 [shape = 'u32[144,128]{1,0:T(1,128)}', space=vmem, size = 0x12000, scoped, tag = 'internal scratch']
  %s0 = inlined_call_operand.vmem [shape: f32[2,8,8,32], index: 0, kind: input, shape index: {}]
  %s1 = inlined_call_operand.vmem [shape: bf16[2,64,128], index: 1, kind: input, shape index: {}]
  %s2 = inlined_call_operand.vmem [shape: f32[2,1,128], index: 2, kind: input, shape index: {}]
  %s3 = inlined_call_operand.vmem [shape: f32[2,8,8,128], index: 3, kind: output, shape index: {}]
  %s4 = sld [smem:[#allocation0]]
  $region45: #{lstm_classifier_forward.7} parent=0
    _
  %s6 = ssub.s32 1, %s4
  %s7 = scalar_select 0, %s6, %s4
  loop: start=0, step=1, limit=4
  $region2: #{lstm_classifier_forward.7} parent=0 // loop_pre_header
    _
  $region3: #{lstm_classifier_forward.7} parent=0 // loop_header
    %s9 = sphi 0, %s13
    %p10 = scmp.ge.s32.totalorder %s9, 4
    %s17 = sphi 0, %s17
    %s19 = sphi 0, %s17
    %s20 = sphi 0, %s19
    %s34 = sphi 0, %s20
    %s40 = sphi 0, %s42
    %s43 = sphi 0, %s40
    %s44 = sphi 0, %s43
    %s60 = sphi 0, %s44
    %s66 = sphi 0, %s68
    %s69 = sphi 0, %s66
    %s70 = sphi 0, %s69
    %s86 = sphi 0, %s70
    %s92 = sphi 0, %s94
    %s95 = sphi 0, %s92
    %s96 = sphi 0, %s95
    %s112 = sphi 0, %s96
  $region4: #{lstm_classifier_forward.7} parent=0 // loop_header_branch
    %12 = sbr.rel (%p10) target = $region8
  $region5: #{lstm_classifier_forward.7} parent=0 // loop_body
    %s14 = ssub.s32 %s9, 1
    %s15 = ssub.s32 %s9, 2
    %s16 = sadd.s32 %s9, 1
    %s18 = sadd.s32 %s17, 1
    %p21 = scmp.eq.s32.totalorder %s9, 1
    %p22 = scmp.ne.s32.totalorder %s17, %s19
    %p23 = scmp.eq.s32.totalorder %s9, 0
    %p24 = por %p22, %p23
    %p25 = scmp.ne.s32.totalorder %s17, %s19
    %p26 = scmp.eq.s32.totalorder %s14, 1
    %p27 = por %p25, %p26
    %p28 = scmp.ne.s32.totalorder %s19, %s20
    %p29 = scmp.eq.s32.totalorder %s14, 0
    %p30 = por %p28, %p29
    %p31 = scmp.ne.s32.totalorder %s19, %s20
    %p32 = scmp.eq.s32.totalorder %s15, 1
    %p33 = por %p31, %p32
    %p35 = scmp.ne.s32.totalorder %s20, %s34
    %p36 = scmp.eq.s32.totalorder %s15, 0
    %p37 = por %p35, %p36
    %s38 = ssub.s32 %s9, %s16
    %p39 = scmp.eq.s32.totalorder %s38, 0
    %s41 = sadd.s32 %s40, 1
    %s42 = scalar_select %p39, %s40, %s41
    %p45 = pneg %p39
    %p46 = scmp.eq.s32.totalorder %s9, 1
    %p47 = por %p45, %p46
    %p48 = scmp.ne.s32.totalorder %s40, %s43
    %p49 = scmp.eq.s32.totalorder %s9, 0
    %p50 = por %p48, %p49
    %p51 = scmp.ne.s32.totalorder %s40, %s43
    %p52 = scmp.eq.s32.totalorder %s14, 1
    %p53 = por %p51, %p52
    %p54 = scmp.ne.s32.totalorder %s43, %s44
    %p55 = scmp.eq.s32.totalorder %s14, 0
    %p56 = por %p54, %p55
    %p57 = scmp.ne.s32.totalorder %s43, %s44
    %p58 = scmp.eq.s32.totalorder %s15, 1
    %p59 = por %p57, %p58
    %p61 = scmp.ne.s32.totalorder %s44, %s60
    %p62 = scmp.eq.s32.totalorder %s15, 0
    %p63 = por %p61, %p62
    %s64 = ssub.s32 %s9, %s16
    %p65 = scmp.eq.s32.totalorder %s64, 0
    %s67 = sadd.s32 %s66, 1
    %s68 = scalar_select %p65, %s66, %s67
    %p71 = pneg %p65
    %p72 = scmp.eq.s32.totalorder %s9, 1
    %p73 = por %p71, %p72
    %p74 = scmp.ne.s32.totalorder %s66, %s69
    %p75 = scmp.eq.s32.totalorder %s9, 0
    %p76 = por %p74, %p75
    %p77 = scmp.ne.s32.totalorder %s66, %s69
    %p78 = scmp.eq.s32.totalorder %s14, 1
    %p79 = por %p77, %p78
    %p80 = scmp.ne.s32.totalorder %s69, %s70
    %p81 = scmp.eq.s32.totalorder %s14, 0
    %p82 = por %p80, %p81
    %p83 = scmp.ne.s32.totalorder %s69, %s70
    %p84 = scmp.eq.s32.totalorder %s15, 1
    %p85 = por %p83, %p84
    %p87 = scmp.ne.s32.totalorder %s70, %s86
    %p88 = scmp.eq.s32.totalorder %s15, 0
    %p89 = por %p87, %p88
    %s90 = ssub.s32 %s9, %s16
    %p91 = scmp.eq.s32.totalorder %s90, 0
    %s93 = sadd.s32 %s92, 1
    %s94 = scalar_select %p91, %s92, %s93
    %p97 = pneg %p91
    %p98 = scmp.eq.s32.totalorder %s9, 1
    %p99 = por %p97, %p98
    %p100 = scmp.ne.s32.totalorder %s92, %s95
    %p101 = scmp.eq.s32.totalorder %s9, 0
    %p102 = por %p100, %p101
    %p103 = scmp.ne.s32.totalorder %s92, %s95
    %p104 = scmp.eq.s32.totalorder %s14, 1
    %p105 = por %p103, %p104
    %p106 = scmp.ne.s32.totalorder %s95, %s96
    %p107 = scmp.eq.s32.totalorder %s14, 0
    %p108 = por %p106, %p107
    %p109 = scmp.ne.s32.totalorder %s95, %s96
    %p110 = scmp.eq.s32.totalorder %s15, 1
    %p111 = por %p109, %p110
    %p113 = scmp.ne.s32.totalorder %s96, %s112
    %p114 = scmp.eq.s32.totalorder %s15, 0
    %p115 = por %p113, %p114
    %p116 = scmp.le.s32.totalorder 1, %s9
    %p117 = scmp.lt.s32.totalorder %s9, 3
    %p118 = pnand %p116, %p117
    %p119 = pneg %p118
    // Predicated region
    $region9: #{lstm_classifier_forward.7} parent=5 // pred_check
      _
    $region10: #{lstm_classifier_forward.7} parent=5 // pred_check_branch
      %121 = sbr.rel (%p118) target = $region12
    $region11: #{lstm_classifier_forward.7} parent=5 // pred_region
      %s122 = ssub.s32 %s9, 1
      // Predicated region
      $region13: #{lstm_classifier_forward.7} parent=11 // pred_check
        %p123 = pneg %p30
      $region14: #{lstm_classifier_forward.7} parent=11 // pred_check_branch
        %125 = sbr.rel (%p123) target = $region16
      $region15: #{lstm_classifier_forward.7} parent=11 // pred_region
        _
      $region16: #{lstm_classifier_forward.7} parent=11 // pred_fallthru
        _
    $region12: #{lstm_classifier_forward.7} parent=5 // pred_fallthru
      _
    %p126 = scmp.lt.s32.totalorder %s9, 2
    // Predicated region
    $region17: #{lstm_classifier_forward.7} parent=5 // pred_check
      %p127 = pneg %p126
    $region18: #{lstm_classifier_forward.7} parent=5 // pred_check_branch
      %129 = sbr.rel (%p127) target = $region20
    $region19: #{lstm_classifier_forward.7} parent=5 // pred_region
      // Predicated region
      $region21: #{lstm_classifier_forward.7} parent=19 // pred_check
        %p130 = pneg %p50
      $region22: #{lstm_classifier_forward.7} parent=19 // pred_check_branch
        %132 = sbr.rel (%p130) target = $region24
      $region23: #{lstm_classifier_forward.7} parent=19 // pred_region
        %p133 = scmp.lt.s32.totalorder %s9, 1
        %s134 = scalar_select %p133, %s9, 1
        %s135 = smul.addr %s134, 8
        %s136 = smul.addr %s135, 4
        %s137 = scalar_lea.vmem %s1, %s136
      $region24: #{lstm_classifier_forward.7} parent=19 // pred_fallthru
        _
      // Predicated region
      $region25: #{lstm_classifier_forward.7} parent=19 // pred_check
        %p138 = pneg %p76
      $region26: #{lstm_classifier_forward.7} parent=19 // pred_check_branch
        %140 = sbr.rel (%p138) target = $region28
      $region27: #{lstm_classifier_forward.7} parent=19 // pred_region
        %p141 = scmp.lt.s32.totalorder %s9, 1
        %s142 = scalar_select %p141, %s9, 1
        %s143 = scalar_lea.vmem %s2, %s142
      $region28: #{lstm_classifier_forward.7} parent=19 // pred_fallthru
        _
    $region20: #{lstm_classifier_forward.7} parent=5 // pred_fallthru
      _
    %p144 = scmp.le.s32.totalorder 1, %s9
    %p145 = scmp.lt.s32.totalorder %s9, 3
    %p146 = pnand %p144, %p145
    %p147 = pneg %p146
    // Predicated region
    $region29: #{lstm_classifier_forward.7} parent=5 // pred_check
      _
    $region30: #{lstm_classifier_forward.7} parent=5 // pred_check_branch
      %149 = sbr.rel (%p146) target = $region32
    $region31: #{lstm_classifier_forward.7} parent=5 // pred_region
      %s150 = ssub.s32 %s9, 1
      %p151 = pneg %p30
      %p152 = pneg %p27
      %p153 = scmp.lt.s32.totalorder %s14, 1
      %s154 = scalar_select %p153, %s14, 1
      %s155 = smul.addr %s154, 8
      %s156 = smul.addr %s155, 4
      %s157 = scalar_lea.vmem %s1, %s156
      %p158 = pneg %p56
      %p159 = pneg %p53
      %p160 = scmp.lt.s32.totalorder %s14, 1
      %s161 = scalar_select %p160, %s14, 1
      %s162 = scalar_lea.vmem %s2, %s161
      %p163 = pneg %p82
      %p164 = pneg %p79
      %p165 = pneg %p108
      %p166 = pneg %p105
      %p167 = scmp.lt.s32.totalorder %s14, 1
      %s168 = scalar_select %p167, %s14, 1
      %s169 = smul.addr %s168, 8
      %s170 = smul.addr %s169, 8
      %s171 = scalar_lea.vmem %s3, %s170
      %p172 = scmp.lt.s32.totalorder %s14, 1
      %s173 = scalar_select %p172, %s14, 1
      %s174 = smul.addr %s173, 8
      %s175 = smul.addr %s174, 4
      %s176 = scalar_lea.vmem %s1, %s175
      %p177 = scmp.lt.s32.totalorder %s14, 1
      %s178 = scalar_select %p177, %s14, 1
      %s179 = scalar_lea.vmem %s2, %s178
      %p180 = scmp.lt.s32.totalorder %s14, 1
      %s181 = scalar_select %p180, %s14, 1
      %s182 = smul.addr %s181, 8
      %s183 = smul.addr %s182, 8
      %s184 = scalar_lea.vmem %s3, %s183
      %v186 = vld [vmem:[%s176] sm:$0xf]
      %v187 = vld [vmem:[%s176 + $0x4] sm:$0xf]
      %v188 = vld [vmem:[%s176 + $0x8] sm:$0xf]
      %v189 = vld [vmem:[%s176 + $0xc] sm:$0xf]
      %v190 = vld [vmem:[%s176 + $0x10] sm:$0xf]
      %v191 = vld [vmem:[%s176 + $0x14] sm:$0xf]
      %v192 = vld [vmem:[%s176 + $0x18] sm:$0xf]
      %v193 = vld [vmem:[%s176 + $0x1c] sm:$0xf]
      %v194 = vld [vmem:[%s0] sm:$0xff]
      %v195 = vld [vmem:[%s0 + $0x8] sm:$0xff]
      %v196 = vld [vmem:[%s0 + $0x10] sm:$0xff]
      %v197 = vld [vmem:[%s0 + $0x18] sm:$0xff]
      %v198 = vld [vmem:[%s0 + $0x20] sm:$0xff]
      %v199 = vld [vmem:[%s0 + $0x28] sm:$0xff]
      %v200 = vld [vmem:[%s0 + $0x30] sm:$0xff]
      %v201 = vld [vmem:[%s0 + $0x38] sm:$0xff]
      %v202 = vpack.c.bf16 %v195, %v194
      %v203 = vpack.c.bf16 %v197, %v196
      %v204 = vpack.c.bf16 %v199, %v198
      %v205 = vpack.c.bf16 %v201, %v200
      %s206 = scalar_lea.vmem %s0, 64
      %v207 = vld [vmem:[%s206] sm:$0xff]
      %v208 = vld [vmem:[%s206 + $0x8] sm:$0xff]
      %v209 = vld [vmem:[%s206 + $0x10] sm:$0xff]
      %v210 = vld [vmem:[%s206 + $0x18] sm:$0xff]
      %v211 = vld [vmem:[%s206 + $0x20] sm:$0xff]
      %v212 = vld [vmem:[%s206 + $0x28] sm:$0xff]
      %v213 = vld [vmem:[%s206 + $0x30] sm:$0xff]
      %v214 = vld [vmem:[%s206 + $0x38] sm:$0xff]
      %v215 = vpack.c.bf16 %v208, %v207
      %v216 = vpack.c.bf16 %v210, %v209
      %v217 = vpack.c.bf16 %v212, %v211
      %v218 = vpack.c.bf16 %v214, %v213
      %v223 = vunpack.c.l.b16 %v190
      %v224 = vunpack.c.l.b16 %v191
      %v225 = vunpack.c.l.b16 %v192
      %v226 = vunpack.c.l.b16 %v193
      %v227 = vpack.c.b16 %v224, %v223
      %v228 = vpack.c.b16 %v226, %v225
      %vm231 = vcmask 261120
      %v233 = vsel %vm231, %v215, 0
      %v236 = vsel %vm231, %v216, 0
      %v239 = vsel %vm231, %v217, 0
      %v242 = vsel %vm231, %v218, 0
      %244 = vmatprep.subr.bf16.mxu0 0
      %245 = vmatpush1.bf16.msra.mxu0 %v227
      %246 = vmatprep.subr.bf16.mxu0 0
      %247 = vmatpush1.bf16.msra.mxu0 %v228
      %248 = vmatprep.subr.bf16.mxu0 0
      %249 = vmatpush1.bf16.msra.mxu0 0
      %250 = vmatprep.subr.bf16.mxu0 0
      %251 = vmatpush1.bf16.msra.mxu0 0
      %252 = vmatprep.subr.bf16.mxu0 0
      %253 = vmatpush1.bf16.msra.mxu0 0
      %254 = vmatprep.subr.bf16.mxu0 0
      %255 = vmatpush1.bf16.msra.mxu0 0
      %256 = vmatprep.subr.bf16.mxu0 0
      %257 = vmatpush1.bf16.msra.mxu0 0
      %258 = vmatprep.subr.bf16.mxu0 0
      %259 = vmatpush1.bf16.msra.mxu0 0
      %260 = vmatprep.subr.bf16.mxu0 0
      %261 = vmatpush1.bf16.msra.mxu0 0
      %262 = vmatprep.subr.bf16.mxu0 0
      %263 = vmatpush1.bf16.msra.mxu0 0
      %264 = vmatprep.subr.bf16.mxu0 0
      %265 = vmatpush1.bf16.msra.mxu0 0
      %266 = vmatprep.subr.bf16.mxu0 0
      %267 = vmatpush1.bf16.msra.mxu0 0
      %268 = vmatprep.subr.bf16.mxu0 0
      %269 = vmatpush1.bf16.msra.mxu0 0
      %270 = vmatprep.subr.bf16.mxu0 0
      %271 = vmatpush1.bf16.msra.mxu0 0
      %272 = vmatprep.subr.bf16.mxu0 0
      %273 = vmatpush1.bf16.msra.mxu0 0
      %274 = vmatprep.subr.bf16.mxu0 0
      %275 = vmatpush1.bf16.msra.mxu0 0
      %276 = vmatprep.mubr.bf16.mxu0 0
      %277 = vmatmul.mubr.bf16.gmra.mrb[0].mxu0 %v233
      %v278 = vpop.f32.mrb[0].mxu0
      %v279 = vadd.f32 0.0, %v278
      %v280 = vpop.f32.mrb[0].mxu0
      %v281 = vpop.f32.mrb[0].mxu0
      %v282 = vadd.f32 0.0, %v281
      %v283 = vpop.f32.mrb[0].mxu0
      %284 = vmatprep.mubr.bf16.mxu0 0
      %285 = vmatmul.mubr.bf16.gmra.mrb[0].mxu0 %v236
      %v286 = vpop.f32.mrb[0].mxu0
      %v287 = vadd.f32 0.0, %v286
      %v288 = vpop.f32.mrb[0].mxu0
      %v289 = vpop.f32.mrb[0].mxu0
      %v290 = vadd.f32 0.0, %v289
      %v291 = vpop.f32.mrb[0].mxu0
      %292 = vmatprep.mubr.bf16.mxu0 0
      %293 = vmatmul.mubr.bf16.gmra.mrb[0].mxu0 %v239
      %v294 = vpop.f32.mrb[0].mxu0
      %v295 = vadd.f32 0.0, %v294
      %v296 = vpop.f32.mrb[0].mxu0
      %v297 = vpop.f32.mrb[0].mxu0
      %v298 = vadd.f32 0.0, %v297
      %v299 = vpop.f32.mrb[0].mxu0
      %300 = vmatprep.mubr.bf16.mxu0 0
      %301 = vmatmul.mubr.bf16.gmra.mrb[0].mxu0 %v242
      %v302 = vpop.f32.mrb[0].mxu0
      %v303 = vadd.f32 0.0, %v302
      %v304 = vpop.f32.mrb[0].mxu0
      %v305 = vpop.f32.mrb[0].mxu0
      %v306 = vadd.f32 0.0, %v305
      %v307 = vpop.f32.mrb[0].mxu0
      %308 = vdwg.mxu0
      %v313 = vunpack.c.l.b16 %v186
      %v314 = vunpack.c.l.b16 %v187
      %v315 = vunpack.c.l.b16 %v188
      %v316 = vunpack.c.l.b16 %v189
      %v317 = vpack.c.b16 %v314, %v313
      %v318 = vpack.c.b16 %v316, %v315
      %v322 = vsel %vm231, %v202, 0
      %v325 = vsel %vm231, %v203, 0
      %v328 = vsel %vm231, %v204, 0
      %v331 = vsel %vm231, %v205, 0
      %333 = vmatprep.subr.bf16.mxu0 0
      %334 = vmatpush1.bf16.msra.mxu0 %v317
      %335 = vmatprep.subr.bf16.mxu0 0
      %336 = vmatpush1.bf16.msra.mxu0 %v318
      %337 = vmatprep.subr.bf16.mxu0 0
      %338 = vmatpush1.bf16.msra.mxu0 0
      %339 = vmatprep.subr.bf16.mxu0 0
      %340 = vmatpush1.bf16.msra.mxu0 0
      %341 = vmatprep.subr.bf16.mxu0 0
      %342 = vmatpush1.bf16.msra.mxu0 0
      %343 = vmatprep.subr.bf16.mxu0 0
      %344 = vmatpush1.bf16.msra.mxu0 0
      %345 = vmatprep.subr.bf16.mxu0 0
      %346 = vmatpush1.bf16.msra.mxu0 0
      %347 = vmatprep.subr.bf16.mxu0 0
      %348 = vmatpush1.bf16.msra.mxu0 0
      %349 = vmatprep.subr.bf16.mxu0 0
      %350 = vmatpush1.bf16.msra.mxu0 0
      %351 = vmatprep.subr.bf16.mxu0 0
      %352 = vmatpush1.bf16.msra.mxu0 0
      %353 = vmatprep.subr.bf16.mxu0 0
      %354 = vmatpush1.bf16.msra.mxu0 0
      %355 = vmatprep.subr.bf16.mxu0 0
      %356 = vmatpush1.bf16.msra.mxu0 0
      %357 = vmatprep.subr.bf16.mxu0 0
      %358 = vmatpush1.bf16.msra.mxu0 0
      %359 = vmatprep.subr.bf16.mxu0 0
      %360 = vmatpush1.bf16.msra.mxu0 0
      %361 = vmatprep.subr.bf16.mxu0 0
      %362 = vmatpush1.bf16.msra.mxu0 0
      %363 = vmatprep.subr.bf16.mxu0 0
      %364 = vmatpush1.bf16.msra.mxu0 0
      %365 = vmatprep.mubr.bf16.mxu0 0
      %366 = vmatmul.mubr.bf16.gmra.mrb[0].mxu0 %v322
      %v367 = vpop.f32.mrb[0].mxu0
      %v368 = vadd.f32 %v279, %v367
      %v369 = vpop.f32.mrb[0].mxu0
      %v370 = vpop.f32.mrb[0].mxu0
      %v371 = vadd.f32 %v282, %v370
      %v372 = vpop.f32.mrb[0].mxu0
      %373 = vmatprep.mubr.bf16.mxu0 0
      %374 = vmatmul.mubr.bf16.gmra.mrb[0].mxu0 %v325
      %v375 = vpop.f32.mrb[0].mxu0
      %v376 = vadd.f32 %v287, %v375
      %v377 = vpop.f32.mrb[0].mxu0
      %v378 = vpop.f32.mrb[0].mxu0
      %v379 = vadd.f32 %v290, %v378
      %v380 = vpop.f32.mrb[0].mxu0
      %381 = vmatprep.mubr.bf16.mxu0 0
      %382 = vmatmul.mubr.bf16.gmra.mrb[0].mxu0 %v328
      %v383 = vpop.f32.mrb[0].mxu0
      %v384 = vadd.f32 %v295, %v383
      %v385 = vpop.f32.mrb[0].mxu0
      %v386 = vpop.f32.mrb[0].mxu0
      %v387 = vadd.f32 %v298, %v386
      %v388 = vpop.f32.mrb[0].mxu0
      %389 = vmatprep.mubr.bf16.mxu0 0
      %390 = vmatmul.mubr.bf16.gmra.mrb[0].mxu0 %v331
      %v391 = vpop.f32.mrb[0].mxu0
      %v392 = vadd.f32 %v303, %v391
      %v393 = vpop.f32.mrb[0].mxu0
      %v394 = vpop.f32.mrb[0].mxu0
      %v395 = vadd.f32 %v306, %v394
      %v396 = vpop.f32.mrb[0].mxu0
      %397 = vdwg.mxu0
      %v398 = vld [vmem:[%s179] sm:$0x1]
      %v400 = vlaneseq
      %v401 = vshrl.u32 %v400, 7
      %v402 = vsub.s32 0, %v401
      %v403 = vrot.slane %v398, %v402
      %v405 = vadd.f32 %v368, %v403
      %v406 = vadd.f32 %v371, %v403
      %v407 = vadd.f32 %v376, %v403
      %v408 = vadd.f32 %v379, %v403
      %v409 = vadd.f32 %v384, %v403
      %v410 = vadd.f32 %v387, %v403
      %v411 = vadd.f32 %v392, %v403
      %v412 = vadd.f32 %v395, %v403
      %413 = vst [vmem:[%s184] sm:$0xff] %v405
      %414 = vst [vmem:[%s184 + $0x8] sm:$0xff] %v406
      %415 = vst [vmem:[%s184 + $0x10] sm:$0xff] %v407
      %416 = vst [vmem:[%s184 + $0x18] sm:$0xff] %v408
      %417 = vst [vmem:[%s184 + $0x20] sm:$0xff] %v409
      %418 = vst [vmem:[%s184 + $0x28] sm:$0xff] %v410
      %419 = vst [vmem:[%s184 + $0x30] sm:$0xff] %v411
      %420 = vst [vmem:[%s184 + $0x38] sm:$0xff] %v412
      %p421 = scmp.lt.s32.totalorder %s14, 1
      %s422 = scalar_select %p421, %s14, 1
      %s423 = smul.addr %s422, 8
      %s424 = smul.addr %s423, 8
      %s425 = scalar_lea.vmem %s3, %s424
      // Predicated region
      $region33: #{lstm_classifier_forward.7} parent=31 // pred_check
        %p426 = pneg %p105
      $region34: #{lstm_classifier_forward.7} parent=31 // pred_check_branch
        %428 = sbr.rel (%p426) target = $region36
      $region35: #{lstm_classifier_forward.7} parent=31 // pred_region
        _
      $region36: #{lstm_classifier_forward.7} parent=31 // pred_fallthru
        _
    $region32: #{lstm_classifier_forward.7} parent=5 // pred_fallthru
      _
    %p429 = scmp.le.s32.totalorder 2, %s9
    // Predicated region
    $region37: #{lstm_classifier_forward.7} parent=5 // pred_check
      %p430 = pneg %p429
    $region38: #{lstm_classifier_forward.7} parent=5 // pred_check_branch
      %432 = sbr.rel (%p430) target = $region40
    $region39: #{lstm_classifier_forward.7} parent=5 // pred_region
      %s433 = ssub.s32 %s9, 2
      // Predicated region
      $region41: #{lstm_classifier_forward.7} parent=39 // pred_check
        %p434 = pneg %p111
      $region42: #{lstm_classifier_forward.7} parent=39 // pred_check_branch
        %436 = sbr.rel (%p434) target = $region44
      $region43: #{lstm_classifier_forward.7} parent=39 // pred_region
        %p437 = scmp.lt.s32.totalorder %s15, 1
        %s438 = scalar_select %p437, %s15, 1
        %s439 = smul.addr %s438, 8
        %s440 = smul.addr %s439, 8
        %s441 = scalar_lea.vmem %s3, %s440
      $region44: #{lstm_classifier_forward.7} parent=39 // pred_fallthru
        _
    $region40: #{lstm_classifier_forward.7} parent=5 // pred_fallthru
      _
  $region6: #{lstm_classifier_forward.7} parent=0 // loop_footer
    %s13 = sadd.s32 1, %s9
  $region7: #{lstm_classifier_forward.7} parent=0 // loop_footer_branch
    %8 = sbr.rel target = $region3
  $region8: #{lstm_classifier_forward.7} parent=0 // loop_exit
    _

// kernel: lstm_classifier_forward.6
$region0: #{lstm_classifier_forward.6}
  #allocation0 [shape = 'u32[]', space=smem, size = 0x4, offset = 0x4, fixed_abs, tag = 'smem constant byte address 0x4 - core index']
  #allocation1 [shape = 'u32[144,128]{1,0:T(1,128)}', space=vmem, size = 0x12000, scoped, tag = 'internal scratch']
  %s0 = inlined_call_operand.vmem [shape: f32[2,8,8,128], index: 0, kind: input, shape index: {}]
  %s1 = inlined_call_operand.vmem [shape: bf16[2,32,128], index: 1, kind: input, shape index: {}]
  %s2 = inlined_call_operand.vmem [shape: f32[2,8,8,32], index: 2, kind: output, shape index: {}]
  %s3 = sld [smem:[#allocation0]]
  $region41: #{lstm_classifier_forward.6} parent=0
    _
  %s5 = ssub.s32 1, %s3
  %s6 = scalar_select 0, %s5, %s3
  loop: start=0, step=1, limit=4
  $region2: #{lstm_classifier_forward.6} parent=0 // loop_pre_header
    _
  $region3: #{lstm_classifier_forward.6} parent=0 // loop_header
    %s8 = sphi 0, %s12
    %p9 = scmp.ge.s32.totalorder %s8, 4
    %s18 = sphi 0, %s20
    %s21 = sphi 0, %s18
    %s22 = sphi 0, %s21
    %s38 = sphi 0, %s22
    %s44 = sphi 0, %s46
    %s47 = sphi 0, %s44
    %s48 = sphi 0, %s47
    %s64 = sphi 0, %s48
    %s70 = sphi 0, %s72
    %s73 = sphi 0, %s70
    %s74 = sphi 0, %s73
    %s90 = sphi 0, %s74
  $region4: #{lstm_classifier_forward.6} parent=0 // loop_header_branch
    %11 = sbr.rel (%p9) target = $region8
  $region5: #{lstm_classifier_forward.6} parent=0 // loop_body
    %s13 = ssub.s32 %s8, 1
    %s14 = ssub.s32 %s8, 2
    %s15 = sadd.s32 %s8, 1
    %s16 = ssub.s32 %s8, %s15
    %p17 = scmp.eq.s32.totalorder %s16, 0
    %s19 = sadd.s32 %s18, 1
    %s20 = scalar_select %p17, %s18, %s19
    %p23 = pneg %p17
    %p24 = scmp.eq.s32.totalorder %s8, 1
    %p25 = por %p23, %p24
    %p26 = scmp.ne.s32.totalorder %s18, %s21
    %p27 = scmp.eq.s32.totalorder %s8, 0
    %p28 = por %p26, %p27
    %p29 = scmp.ne.s32.totalorder %s18, %s21
    %p30 = scmp.eq.s32.totalorder %s13, 1
    %p31 = por %p29, %p30
    %p32 = scmp.ne.s32.totalorder %s21, %s22
    %p33 = scmp.eq.s32.totalorder %s13, 0
    %p34 = por %p32, %p33
    %p35 = scmp.ne.s32.totalorder %s21, %s22
    %p36 = scmp.eq.s32.totalorder %s14, 1
    %p37 = por %p35, %p36
    %p39 = scmp.ne.s32.totalorder %s22, %s38
    %p40 = scmp.eq.s32.totalorder %s14, 0
    %p41 = por %p39, %p40
    %s42 = ssub.s32 %s8, %s15
    %p43 = scmp.eq.s32.totalorder %s42, 0
    %s45 = sadd.s32 %s44, 1
    %s46 = scalar_select %p43, %s44, %s45
    %p49 = pneg %p43
    %p50 = scmp.eq.s32.totalorder %s8, 1
    %p51 = por %p49, %p50
    %p52 = scmp.ne.s32.totalorder %s44, %s47
    %p53 = scmp.eq.s32.totalorder %s8, 0
    %p54 = por %p52, %p53
    %p55 = scmp.ne.s32.totalorder %s44, %s47
    %p56 = scmp.eq.s32.totalorder %s13, 1
    %p57 = por %p55, %p56
    %p58 = scmp.ne.s32.totalorder %s47, %s48
    %p59 = scmp.eq.s32.totalorder %s13, 0
    %p60 = por %p58, %p59
    %p61 = scmp.ne.s32.totalorder %s47, %s48
    %p62 = scmp.eq.s32.totalorder %s14, 1
    %p63 = por %p61, %p62
    %p65 = scmp.ne.s32.totalorder %s48, %s64
    %p66 = scmp.eq.s32.totalorder %s14, 0
    %p67 = por %p65, %p66
    %s68 = ssub.s32 %s8, %s15
    %p69 = scmp.eq.s32.totalorder %s68, 0
    %s71 = sadd.s32 %s70, 1
    %s72 = scalar_select %p69, %s70, %s71
    %p75 = pneg %p69
    %p76 = scmp.eq.s32.totalorder %s8, 1
    %p77 = por %p75, %p76
    %p78 = scmp.ne.s32.totalorder %s70, %s73
    %p79 = scmp.eq.s32.totalorder %s8, 0
    %p80 = por %p78, %p79
    %p81 = scmp.ne.s32.totalorder %s70, %s73
    %p82 = scmp.eq.s32.totalorder %s13, 1
    %p83 = por %p81, %p82
    %p84 = scmp.ne.s32.totalorder %s73, %s74
    %p85 = scmp.eq.s32.totalorder %s13, 0
    %p86 = por %p84, %p85
    %p87 = scmp.ne.s32.totalorder %s73, %s74
    %p88 = scmp.eq.s32.totalorder %s14, 1
    %p89 = por %p87, %p88
    %p91 = scmp.ne.s32.totalorder %s74, %s90
    %p92 = scmp.eq.s32.totalorder %s14, 0
    %p93 = por %p91, %p92
    %p94 = scmp.le.s32.totalorder 1, %s8
    %p95 = scmp.lt.s32.totalorder %s8, 3
    %p96 = pnand %p94, %p95
    %p97 = pneg %p96
    // Predicated region
    $region9: #{lstm_classifier_forward.6} parent=5 // pred_check
      _
    $region10: #{lstm_classifier_forward.6} parent=5 // pred_check_branch
      %99 = sbr.rel (%p96) target = $region12
    $region11: #{lstm_classifier_forward.6} parent=5 // pred_region
      %s100 = ssub.s32 %s8, 1
    $region12: #{lstm_classifier_forward.6} parent=5 // pred_fallthru
      _
    %p101 = scmp.lt.s32.totalorder %s8, 2
    // Predicated region
    $region13: #{lstm_classifier_forward.6} parent=5 // pred_check
      %p102 = pneg %p101
    $region14: #{lstm_classifier_forward.6} parent=5 // pred_check_branch
      %104 = sbr.rel (%p102) target = $region16
    $region15: #{lstm_classifier_forward.6} parent=5 // pred_region
      // Predicated region
      $region17: #{lstm_classifier_forward.6} parent=15 // pred_check
        %p105 = pneg %p28
      $region18: #{lstm_classifier_forward.6} parent=15 // pred_check_branch
        %107 = sbr.rel (%p105) target = $region20
      $region19: #{lstm_classifier_forward.6} parent=15 // pred_region
        %p108 = scmp.lt.s32.totalorder %s8, 1
        %s109 = scalar_select %p108, %s8, 1
        %s110 = smul.addr %s109, 8
        %s111 = smul.addr %s110, 8
        %s112 = scalar_lea.vmem %s0, %s111
      $region20: #{lstm_classifier_forward.6} parent=15 // pred_fallthru
        _
      // Predicated region
      $region21: #{lstm_classifier_forward.6} parent=15 // pred_check
        %p113 = pneg %p54
      $region22: #{lstm_classifier_forward.6} parent=15 // pred_check_branch
        %115 = sbr.rel (%p113) target = $region24
      $region23: #{lstm_classifier_forward.6} parent=15 // pred_region
        %p116 = scmp.lt.s32.totalorder %s8, 1
        %s117 = scalar_select %p116, %s8, 1
        %s118 = smul.addr %s117, 4
        %s119 = smul.addr %s118, 4
        %s120 = scalar_lea.vmem %s1, %s119
      $region24: #{lstm_classifier_forward.6} parent=15 // pred_fallthru
        _
    $region16: #{lstm_classifier_forward.6} parent=5 // pred_fallthru
      _
    %p121 = scmp.le.s32.totalorder 1, %s8
    %p122 = scmp.lt.s32.totalorder %s8, 3
    %p123 = pnand %p121, %p122
    %p124 = pneg %p123
    // Predicated region
    $region25: #{lstm_classifier_forward.6} parent=5 // pred_check
      _
    $region26: #{lstm_classifier_forward.6} parent=5 // pred_check_branch
      %126 = sbr.rel (%p123) target = $region28
    $region27: #{lstm_classifier_forward.6} parent=5 // pred_region
      %s127 = ssub.s32 %s8, 1
      %p128 = scmp.lt.s32.totalorder %s13, 1
      %s129 = scalar_select %p128, %s13, 1
      %s130 = smul.addr %s129, 8
      %s131 = smul.addr %s130, 8
      %s132 = scalar_lea.vmem %s0, %s131
      %p133 = pneg %p34
      %p134 = pneg %p31
      %p135 = scmp.lt.s32.totalorder %s13, 1
      %s136 = scalar_select %p135, %s13, 1
      %s137 = smul.addr %s136, 4
      %s138 = smul.addr %s137, 4
      %s139 = scalar_lea.vmem %s1, %s138
      %p140 = pneg %p60
      %p141 = pneg %p57
      %p142 = pneg %p86
      %p143 = pneg %p83
      %p144 = scmp.lt.s32.totalorder %s13, 1
      %s145 = scalar_select %p144, %s13, 1
      %s146 = smul.addr %s145, 8
      %s147 = smul.addr %s146, 8
      %s148 = scalar_lea.vmem %s2, %s147
      %p149 = scmp.lt.s32.totalorder %s13, 1
      %s150 = scalar_select %p149, %s13, 1
      %s151 = smul.addr %s150, 8
      %s152 = smul.addr %s151, 8
      %s153 = scalar_lea.vmem %s0, %s152
      %p154 = scmp.lt.s32.totalorder %s13, 1
      %s155 = scalar_select %p154, %s13, 1
      %s156 = smul.addr %s155, 4
      %s157 = smul.addr %s156, 4
      %s158 = scalar_lea.vmem %s1, %s157
      %p159 = scmp.lt.s32.totalorder %s13, 1
      %s160 = scalar_select %p159, %s13, 1
      %s161 = smul.addr %s160, 8
      %s162 = smul.addr %s161, 8
      %s163 = scalar_lea.vmem %s2, %s162
      %v165 = vld [vmem:[%s158] sm:$0xf]
      %v166 = vld [vmem:[%s158 + $0x4] sm:$0xf]
      %v167 = vld [vmem:[%s158 + $0x8] sm:$0xf]
      %v168 = vld [vmem:[%s158 + $0xc] sm:$0xf]
      %p169 = scmp.eq.s32.totalorder %s13, 0
      %s170 = scalar_select %p169, 0, 7
      %s171 = smul.u32 %s170, 8
      %s172 = scalar_lea.vmem %s153, %s171
      %v173 = vld [vmem:[%s172] sm:$0xff]
      %v178 = vunpack.c.l.b16 %v165
      %v179 = vunpack.c.l.b16 %v166
      %v180 = vunpack.c.l.b16 %v167
      %v181 = vunpack.c.l.b16 %v168
      %v182 = vpack.c.b16 %v179, %v178
      %v183 = vpack.c.b16 %v181, %v180
      %vm186 = vcmask 261120
      %v188 = vsel %vm186, 0, 0
      %190 = vmatprep.subr.bf16.mxu0 0
      %191 = vmatpush1.bf16.msra.mxu0 %v182
      %192 = vmatprep.subr.bf16.mxu0 0
      %193 = vmatpush1.bf16.msra.mxu0 %v183
      %194 = vmatprep.subr.bf16.mxu0 0
      %195 = vmatpush1.bf16.msra.mxu0 0
      %196 = vmatprep.subr.bf16.mxu0 0
      %197 = vmatpush1.bf16.msra.mxu0 0
      %198 = vmatprep.subr.bf16.mxu0 0
      %199 = vmatpush1.bf16.msra.mxu0 0
      %200 = vmatprep.subr.bf16.mxu0 0
      %201 = vmatpush1.bf16.msra.mxu0 0
      %202 = vmatprep.subr.bf16.mxu0 0
      %203 = vmatpush1.bf16.msra.mxu0 0
      %204 = vmatprep.subr.bf16.mxu0 0
      %205 = vmatpush1.bf16.msra.mxu0 0
      %206 = vmatprep.subr.bf16.mxu0 0
      %207 = vmatpush1.bf16.msra.mxu0 0
      %208 = vmatprep.subr.bf16.mxu0 0
      %209 = vmatpush1.bf16.msra.mxu0 0
      %210 = vmatprep.subr.bf16.mxu0 0
      %211 = vmatpush1.bf16.msra.mxu0 0
      %212 = vmatprep.subr.bf16.mxu0 0
      %213 = vmatpush1.bf16.msra.mxu0 0
      %214 = vmatprep.subr.bf16.mxu0 0
      %215 = vmatpush1.bf16.msra.mxu0 0
      %216 = vmatprep.subr.bf16.mxu0 0
      %217 = vmatpush1.bf16.msra.mxu0 0
      %218 = vmatprep.subr.bf16.mxu0 0
      %219 = vmatpush1.bf16.msra.mxu0 0
      %220 = vmatprep.subr.bf16.mxu0 0
      %221 = vmatpush1.bf16.msra.mxu0 0
      %222 = vmatprep.mubr.bf16.mxu0 0
      %223 = vmatmul.mubr.bf16.gmra.mrb[0].mxu0 %v188
      %v224 = vpop.f32.mrb[0].mxu0
      %v225 = vadd.f32 0.0, %v224
      %v226 = vpop.f32.mrb[0].mxu0
      %v227 = vpop.f32.mrb[0].mxu0
      %v228 = vpop.f32.mrb[0].mxu0
      %229 = vdwg.mxu0
      %v230 = vadd.f32 %v173, %v225
      %v231 = vxor.u32 %v230, 2147483648
      %v232 = vmul.f32 %v231, 1.442695
      %v233 = vpow.pop %v232
      %v234 = vadd.f32 %v233, 1.0
      %v235 = vrcp.pop %v234
      %v236 = vmul.f32 1.0, %v235
      %v237 = vtanh.pop %v230
      %v238 = vmul.f32 %v236, 0.0
      %240 = vrot.lane.b32.xlu0 %v237, 64
      %v241 = vpop.permute.xlu0 %240
      %v243 = vmul.f32 %v236, %v241
      %245 = vrot.lane.b32.xlu0 %v243, 32
      %v246 = vpop.permute.xlu0 %245
      %v248 = vadd.f32 %v238, %v246
      %v249 = vtanh.pop %v248
      %251 = vrot.lane.b32.xlu0 %v249, 64
      %v252 = vpop.permute.xlu0 %251
      %v254 = vmul.f32 %v236, %v252
      %256 = vrot.lane.b32.xlu0 %v254, 32
      %v257 = vpop.permute.xlu0 %256
      %s259 = scalar_lea.vmem %s163, %s171
      %260 = vst.msk [vmem:[%s259] sm:$0xff] %vm186, %v257
      %s261 = scalar_select %p169, 1, 6
      %s262 = smul.u32 %s261, 8
      %s263 = scalar_lea.vmem %s153, %s262
      %v264 = vld [vmem:[%s263] sm:$0xff]
      %v265 = vpack.c.bf16 %v254, %v254
      %267 = vrot.lane.b32.xlu0 %v265, 32
      %v268 = vpop.permute.xlu0 %267
      %v270 = vsel %vm186, %v268, 0
      %272 = vmatprep.subr.bf16.mxu0 0
      %273 = vmatpush1.bf16.msra.mxu0 %v182
      %274 = vmatprep.subr.bf16.mxu0 0
      %275 = vmatpush1.bf16.msra.mxu0 %v183
      %276 = vmatprep.subr.bf16.mxu0 0
      %277 = vmatpush1.bf16.msra.mxu0 0
      %278 = vmatprep.subr.bf16.mxu0 0
      %279 = vmatpush1.bf16.msra.mxu0 0
      %280 = vmatprep.subr.bf16.mxu0 0
      %281 = vmatpush1.bf16.msra.mxu0 0
      %282 = vmatprep.subr.bf16.mxu0 0
      %283 = vmatpush1.bf16.msra.mxu0 0
      %284 = vmatprep.subr.bf16.mxu0 0
      %285 = vmatpush1.bf16.msra.mxu0 0
      %286 = vmatprep.subr.bf16.mxu0 0
      %287 = vmatpush1.bf16.msra.mxu0 0
      %288 = vmatprep.subr.bf16.mxu0 0
      %289 = vmatpush1.bf16.msra.mxu0 0
      %290 = vmatprep.subr.bf16.mxu0 0
      %291 = vmatpush1.bf16.msra.mxu0 0
      %292 = vmatprep.subr.bf16.mxu0 0
      %293 = vmatpush1.bf16.msra.mxu0 0
      %294 = vmatprep.subr.bf16.mxu0 0
      %295 = vmatpush1.bf16.msra.mxu0 0
      %296 = vmatprep.subr.bf16.mxu0 0
      %297 = vmatpush1.bf16.msra.mxu0 0
      %298 = vmatprep.subr.bf16.mxu0 0
      %299 = vmatpush1.bf16.msra.mxu0 0
      %300 = vmatprep.subr.bf16.mxu0 0
      %301 = vmatpush1.bf16.msra.mxu0 0
      %302 = vmatprep.subr.bf16.mxu0 0
      %303 = vmatpush1.bf16.msra.mxu0 0
      %304 = vmatprep.mubr.bf16.mxu0 0
      %305 = vmatmul.mubr.bf16.gmra.mrb[0].mxu0 %v270
      %v306 = vpop.f32.mrb[0].mxu0
      %v307 = vadd.f32 0.0, %v306
      %v308 = vpop.f32.mrb[0].mxu0
      %v309 = vpop.f32.mrb[0].mxu0
      %v310 = vpop.f32.mrb[0].mxu0
      %311 = vdwg.mxu0
      %v312 = vadd.f32 %v264, %v307
      %v313 = vxor.u32 %v312, 2147483648
      %v314 = vmul.f32 %v313, 1.442695
      %v315 = vpow.pop %v314
      %v316 = vadd.f32 %v315, 1.0
      %v317 = vrcp.pop %v316
      %v318 = vmul.f32 1.0, %v317
      %v319 = vtanh.pop %v312
      %v320 = vmul.f32 %v318, %v248
      %322 = vrot.lane.b32.xlu0 %v319, 64
      %v323 = vpop.permute.xlu0 %322
      %v325 = vmul.f32 %v318, %v323
      %327 = vrot.lane.b32.xlu0 %v325, 32
      %v328 = vpop.permute.xlu0 %327
      %v330 = vadd.f32 %v320, %v328
      %v331 = vtanh.pop %v330
      %333 = vrot.lane.b32.xlu0 %v331, 64
      %v334 = vpop.permute.xlu0 %333
      %v336 = vmul.f32 %v318, %v334
      %338 = vrot.lane.b32.xlu0 %v336, 32
      %v339 = vpop.permute.xlu0 %338
      %s341 = scalar_lea.vmem %s163, %s262
      %342 = vst.msk [vmem:[%s341] sm:$0xff] %vm186, %v339
      %s343 = scalar_select %p169, 2, 5
      %s344 = smul.u32 %s343, 8
      %s345 = scalar_lea.vmem %s153, %s344
      %v346 = vld [vmem:[%s345] sm:$0xff]
      %v347 = vpack.c.bf16 %v336, %v336
      %349 = vrot.lane.b32.xlu0 %v347, 32
      %v350 = vpop.permute.xlu0 %349
      %v352 = vsel %vm186, %v350, 0
      %354 = vmatprep.subr.bf16.mxu0 0
      %355 = vmatpush1.bf16.msra.mxu0 %v182
      %356 = vmatprep.subr.bf16.mxu0 0
      %357 = vmatpush1.bf16.msra.mxu0 %v183
      %358 = vmatprep.subr.bf16.mxu0 0
      %359 = vmatpush1.bf16.msra.mxu0 0
      %360 = vmatprep.subr.bf16.mxu0 0
      %361 = vmatpush1.bf16.msra.mxu0 0
      %362 = vmatprep.subr.bf16.mxu0 0
      %363 = vmatpush1.bf16.msra.mxu0 0
      %364 = vmatprep.subr.bf16.mxu0 0
      %365 = vmatpush1.bf16.msra.mxu0 0
      %366 = vmatprep.subr.bf16.mxu0 0
      %367 = vmatpush1.bf16.msra.mxu0 0
      %368 = vmatprep.subr.bf16.mxu0 0
      %369 = vmatpush1.bf16.msra.mxu0 0
      %370 = vmatprep.subr.bf16.mxu0 0
      %371 = vmatpush1.bf16.msra.mxu0 0
      %372 = vmatprep.subr.bf16.mxu0 0
      %373 = vmatpush1.bf16.msra.mxu0 0
      %374 = vmatprep.subr.bf16.mxu0 0
      %375 = vmatpush1.bf16.msra.mxu0 0
      %376 = vmatprep.subr.bf16.mxu0 0
      %377 = vmatpush1.bf16.msra.mxu0 0
      %378 = vmatprep.subr.bf16.mxu0 0
      %379 = vmatpush1.bf16.msra.mxu0 0
      %380 = vmatprep.subr.bf16.mxu0 0
      %381 = vmatpush1.bf16.msra.mxu0 0
      %382 = vmatprep.subr.bf16.mxu0 0
      %383 = vmatpush1.bf16.msra.mxu0 0
      %384 = vmatprep.subr.bf16.mxu0 0
      %385 = vmatpush1.bf16.msra.mxu0 0
      %386 = vmatprep.mubr.bf16.mxu0 0
      %387 = vmatmul.mubr.bf16.gmra.mrb[0].mxu0 %v352
      %v388 = vpop.f32.mrb[0].mxu0
      %v389 = vadd.f32 0.0, %v388
      %v390 = vpop.f32.mrb[0].mxu0
      %v391 = vpop.f32.mrb[0].mxu0
      %v392 = vpop.f32.mrb[0].mxu0
      %393 = vdwg.mxu0
      %v394 = vadd.f32 %v346, %v389
      %v395 = vxor.u32 %v394, 2147483648
      %v396 = vmul.f32 %v395, 1.442695
      %v397 = vpow.pop %v396
      %v398 = vadd.f32 %v397, 1.0
      %v399 = vrcp.pop %v398
      %v400 = vmul.f32 1.0, %v399
      %v401 = vtanh.pop %v394
      %v402 = vmul.f32 %v400, %v330
      %404 = vrot.lane.b32.xlu0 %v401, 64
      %v405 = vpop.permute.xlu0 %404
      %v407 = vmul.f32 %v400, %v405
      %409 = vrot.lane.b32.xlu0 %v407, 32
      %v410 = vpop.permute.xlu0 %409
      %v412 = vadd.f32 %v402, %v410
      %v413 = vtanh.pop %v412
      %415 = vrot.lane.b32.xlu0 %v413, 64
      %v416 = vpop.permute.xlu0 %415
      %v418 = vmul.f32 %v400, %v416
      %420 = vrot.lane.b32.xlu0 %v418, 32
      %v421 = vpop.permute.xlu0 %420
      %s423 = scalar_lea.vmem %s163, %s344
      %424 = vst.msk [vmem:[%s423] sm:$0xff] %vm186, %v421
      %s425 = scalar_select %p169, 3, 4
      %s426 = smul.u32 %s425, 8
      %s427 = scalar_lea.vmem %s153, %s426
      %v428 = vld [vmem:[%s427] sm:$0xff]
      %v429 = vpack.c.bf16 %v418, %v418
      %431 = vrot.lane.b32.xlu0 %v429, 32
      %v432 = vpop.permute.xlu0 %431
      %v434 = vsel %vm186, %v432, 0
      %436 = vmatprep.subr.bf16.mxu0 0
      %437 = vmatpush1.bf16.msra.mxu0 %v182
      %438 = vmatprep.subr.bf16.mxu0 0
      %439 = vmatpush1.bf16.msra.mxu0 %v183
      %440 = vmatprep.subr.bf16.mxu0 0
      %441 = vmatpush1.bf16.msra.mxu0 0
      %442 = vmatprep.subr.bf16.mxu0 0
      %443 = vmatpush1.bf16.msra.mxu0 0
      %444 = vmatprep.subr.bf16.mxu0 0
      %445 = vmatpush1.bf16.msra.mxu0 0
      %446 = vmatprep.subr.bf16.mxu0 0
      %447 = vmatpush1.bf16.msra.mxu0 0
      %448 = vmatprep.subr.bf16.mxu0 0
      %449 = vmatpush1.bf16.msra.mxu0 0
      %450 = vmatprep.subr.bf16.mxu0 0
      %451 = vmatpush1.bf16.msra.mxu0 0
      %452 = vmatprep.subr.bf16.mxu0 0
      %453 = vmatpush1.bf16.msra.mxu0 0
      %454 = vmatprep.subr.bf16.mxu0 0
      %455 = vmatpush1.bf16.msra.mxu0 0
      %456 = vmatprep.subr.bf16.mxu0 0
      %457 = vmatpush1.bf16.msra.mxu0 0
      %458 = vmatprep.subr.bf16.mxu0 0
      %459 = vmatpush1.bf16.msra.mxu0 0
      %460 = vmatprep.subr.bf16.mxu0 0
      %461 = vmatpush1.bf16.msra.mxu0 0
      %462 = vmatprep.subr.bf16.mxu0 0
      %463 = vmatpush1.bf16.msra.mxu0 0
      %464 = vmatprep.subr.bf16.mxu0 0
      %465 = vmatpush1.bf16.msra.mxu0 0
      %466 = vmatprep.subr.bf16.mxu0 0
      %467 = vmatpush1.bf16.msra.mxu0 0
      %468 = vmatprep.mubr.bf16.mxu0 0
      %469 = vmatmul.mubr.bf16.gmra.mrb[0].mxu0 %v434
      %v470 = vpop.f32.mrb[0].mxu0
      %v471 = vadd.f32 0.0, %v470
      %v472 = vpop.f32.mrb[0].mxu0
      %v473 = vpop.f32.mrb[0].mxu0
      %v474 = vpop.f32.mrb[0].mxu0
      %475 = vdwg.mxu0
      %v476 = vadd.f32 %v428, %v471
      %v477 = vxor.u32 %v476, 2147483648
      %v478 = vmul.f32 %v477, 1.442695
      %v479 = vpow.pop %v478
      %v480 = vadd.f32 %v479, 1.0
      %v481 = vrcp.pop %v480
      %v482 = vmul.f32 1.0, %v481
      %v483 = vtanh.pop %v476
      %v484 = vmul.f32 %v482, %v412
      %486 = vrot.lane.b32.xlu0 %v483, 64
      %v487 = vpop.permute.xlu0 %486
      %v489 = vmul.f32 %v482, %v487
      %491 = vrot.lane.b32.xlu0 %v489, 32
      %v492 = vpop.permute.xlu0 %491
      %v494 = vadd.f32 %v484, %v492
      %v495 = vtanh.pop %v494
      %497 = vrot.lane.b32.xlu0 %v495, 64
      %v498 = vpop.permute.xlu0 %497
      %v500 = vmul.f32 %v482, %v498
      %502 = vrot.lane.b32.xlu0 %v500, 32
      %v503 = vpop.permute.xlu0 %502
      %s505 = scalar_lea.vmem %s163, %s426
      %506 = vst.msk [vmem:[%s505] sm:$0xff] %vm186, %v503
      %s507 = scalar_select %p169, 4, 3
      %s508 = smul.u32 %s507, 8
      %s509 = scalar_lea.vmem %s153, %s508
      %v510 = vld [vmem:[%s509] sm:$0xff]
      %v511 = vpack.c.bf16 %v500, %v500
      %513 = vrot.lane.b32.xlu0 %v511, 32
      %v514 = vpop.permute.xlu0 %513
      %v516 = vsel %vm186, %v514, 0
      %518 = vmatprep.subr.bf16.mxu0 0
      %519 = vmatpush1.bf16.msra.mxu0 %v182
      %520 = vmatprep.subr.bf16.mxu0 0
      %521 = vmatpush1.bf16.msra.mxu0 %v183
      %522 = vmatprep.subr.bf16.mxu0 0
      %523 = vmatpush1.bf16.msra.mxu0 0
      %524 = vmatprep.subr.bf16.mxu0 0
      %525 = vmatpush1.bf16.msra.mxu0 0
      %526 = vmatprep.subr.bf16.mxu0 0
      %527 = vmatpush1.bf16.msra.mxu0 0
      %528 = vmatprep.subr.bf16.mxu0 0
      %529 = vmatpush1.bf16.msra.mxu0 0
      %530 = vmatprep.subr.bf16.mxu0 0
      %531 = vmatpush1.bf16.msra.mxu0 0
      %532 = vmatprep.subr.bf16.mxu0 0
      %533 = vmatpush1.bf16.msra.mxu0 0
      %534 = vmatprep.subr.bf16.mxu0 0
      %535 = vmatpush1.bf16.msra.mxu0 0
      %536 = vmatprep.subr.bf16.mxu0 0
      %537 = vmatpush1.bf16.msra.mxu0 0
      %538 = vmatprep.subr.bf16.mxu0 0
      %539 = vmatpush1.bf16.msra.mxu0 0
      %540 = vmatprep.subr.bf16.mxu0 0
      %541 = vmatpush1.bf16.msra.mxu0 0
      %542 = vmatprep.subr.bf16.mxu0 0
      %543 = vmatpush1.bf16.msra.mxu0 0
      %544 = vmatprep.subr.bf16.mxu0 0
      %545 = vmatpush1.bf16.msra.mxu0 0
      %546 = vmatprep.subr.bf16.mxu0 0
      %547 = vmatpush1.bf16.msra.mxu0 0
      %548 = vmatprep.subr.bf16.mxu0 0
      %549 = vmatpush1.bf16.msra.mxu0 0
      %550 = vmatprep.mubr.bf16.mxu0 0
      %551 = vmatmul.mubr.bf16.gmra.mrb[0].mxu0 %v516
      %v552 = vpop.f32.mrb[0].mxu0
      %v553 = vadd.f32 0.0, %v552
      %v554 = vpop.f32.mrb[0].mxu0
      %v555 = vpop.f32.mrb[0].mxu0
      %v556 = vpop.f32.mrb[0].mxu0
      %557 = vdwg.mxu0
      %v558 = vadd.f32 %v510, %v553
      %v559 = vxor.u32 %v558, 2147483648
      %v560 = vmul.f32 %v559, 1.442695
      %v561 = vpow.pop %v560
      %v562 = vadd.f32 %v561, 1.0
      %v563 = vrcp.pop %v562
      %v564 = vmul.f32 1.0, %v563
      %v565 = vtanh.pop %v558
      %v566 = vmul.f32 %v564, %v494
      %568 = vrot.lane.b32.xlu0 %v565, 64
      %v569 = vpop.permute.xlu0 %568
      %v571 = vmul.f32 %v564, %v569
      %573 = vrot.lane.b32.xlu0 %v571, 32
      %v574 = vpop.permute.xlu0 %573
      %v576 = vadd.f32 %v566, %v574
      %v577 = vtanh.pop %v576
      %579 = vrot.lane.b32.xlu0 %v577, 64
      %v580 = vpop.permute.xlu0 %579
      %v582 = vmul.f32 %v564, %v580
      %584 = vrot.lane.b32.xlu0 %v582, 32
      %v585 = vpop.permute.xlu0 %584
      %s587 = scalar_lea.vmem %s163, %s508
      %588 = vst.msk [vmem:[%s587] sm:$0xff] %vm186, %v585
      %s589 = scalar_select %p169, 5, 2
      %s590 = smul.u32 %s589, 8
      %s591 = scalar_lea.vmem %s153, %s590
      %v592 = vld [vmem:[%s591] sm:$0xff]
      %v593 = vpack.c.bf16 %v582, %v582
      %595 = vrot.lane.b32.xlu0 %v593, 32
      %v596 = vpop.permute.xlu0 %595
      %v598 = vsel %vm186, %v596, 0
      %600 = vmatprep.subr.bf16.mxu0 0
      %601 = vmatpush1.bf16.msra.mxu0 %v182
      %602 = vmatprep.subr.bf16.mxu0 0
      %603 = vmatpush1.bf16.msra.mxu0 %v183
      %604 = vmatprep.subr.bf16.mxu0 0
      %605 = vmatpush1.bf16.msra.mxu0 0
      %606 = vmatprep.subr.bf16.mxu0 0
      %607 = vmatpush1.bf16.msra.mxu0 0
      %608 = vmatprep.subr.bf16.mxu0 0
      %609 = vmatpush1.bf16.msra.mxu0 0
      %610 = vmatprep.subr.bf16.mxu0 0
      %611 = vmatpush1.bf16.msra.mxu0 0
      %612 = vmatprep.subr.bf16.mxu0 0
      %613 = vmatpush1.bf16.msra.mxu0 0
      %614 = vmatprep.subr.bf16.mxu0 0
      %615 = vmatpush1.bf16.msra.mxu0 0
      %616 = vmatprep.subr.bf16.mxu0 0
      %617 = vmatpush1.bf16.msra.mxu0 0
      %618 = vmatprep.subr.bf16.mxu0 0
      %619 = vmatpush1.bf16.msra.mxu0 0
      %620 = vmatprep.subr.bf16.mxu0 0
      %621 = vmatpush1.bf16.msra.mxu0 0
      %622 = vmatprep.subr.bf16.mxu0 0
      %623 = vmatpush1.bf16.msra.mxu0 0
      %624 = vmatprep.subr.bf16.mxu0 0
      %625 = vmatpush1.bf16.msra.mxu0 0
      %626 = vmatprep.subr.bf16.mxu0 0
      %627 = vmatpush1.bf16.msra.mxu0 0
      %628 = vmatprep.subr.bf16.mxu0 0
      %629 = vmatpush1.bf16.msra.mxu0 0
      %630 = vmatprep.subr.bf16.mxu0 0
      %631 = vmatpush1.bf16.msra.mxu0 0
      %632 = vmatprep.mubr.bf16.mxu0 0
      %633 = vmatmul.mubr.bf16.gmra.mrb[0].mxu0 %v598
      %v634 = vpop.f32.mrb[0].mxu0
      %v635 = vadd.f32 0.0, %v634
      %v636 = vpop.f32.mrb[0].mxu0
      %v637 = vpop.f32.mrb[0].mxu0
      %v638 = vpop.f32.mrb[0].mxu0
      %639 = vdwg.mxu0
      %v640 = vadd.f32 %v592, %v635
      %v641 = vxor.u32 %v640, 2147483648
      %v642 = vmul.f32 %v641, 1.442695
      %v643 = vpow.pop %v642
      %v644 = vadd.f32 %v643, 1.0
      %v645 = vrcp.pop %v644
      %v646 = vmul.f32 1.0, %v645
      %v647 = vtanh.pop %v640
      %v648 = vmul.f32 %v646, %v576
      %650 = vrot.lane.b32.xlu0 %v647, 64
      %v651 = vpop.permute.xlu0 %650
      %v653 = vmul.f32 %v646, %v651
      %655 = vrot.lane.b32.xlu0 %v653, 32
      %v656 = vpop.permute.xlu0 %655
      %v658 = vadd.f32 %v648, %v656
      %v659 = vtanh.pop %v658
      %661 = vrot.lane.b32.xlu0 %v659, 64
      %v662 = vpop.permute.xlu0 %661
      %v664 = vmul.f32 %v646, %v662
      %666 = vrot.lane.b32.xlu0 %v664, 32
      %v667 = vpop.permute.xlu0 %666
      %s669 = scalar_lea.vmem %s163, %s590
      %670 = vst.msk [vmem:[%s669] sm:$0xff] %vm186, %v667
      %s671 = scalar_select %p169, 6, 1
      %s672 = smul.u32 %s671, 8
      %s673 = scalar_lea.vmem %s153, %s672
      %v674 = vld [vmem:[%s673] sm:$0xff]
      %v675 = vpack.c.bf16 %v664, %v664
      %677 = vrot.lane.b32.xlu0 %v675, 32
      %v678 = vpop.permute.xlu0 %677
      %v680 = vsel %vm186, %v678, 0
      %682 = vmatprep.subr.bf16.mxu0 0
      %683 = vmatpush1.bf16.msra.mxu0 %v182
      %684 = vmatprep.subr.bf16.mxu0 0
      %685 = vmatpush1.bf16.msra.mxu0 %v183
      %686 = vmatprep.subr.bf16.mxu0 0
      %687 = vmatpush1.bf16.msra.mxu0 0
      %688 = vmatprep.subr.bf16.mxu0 0
      %689 = vmatpush1.bf16.msra.mxu0 0
      %690 = vmatprep.subr.bf16.mxu0 0
      %691 = vmatpush1.bf16.msra.mxu0 0
      %692 = vmatprep.subr.bf16.mxu0 0
      %693 = vmatpush1.bf16.msra.mxu0 0
      %694 = vmatprep.subr.bf16.mxu0 0
      %695 = vmatpush1.bf16.msra.mxu0 0
      %696 = vmatprep.subr.bf16.mxu0 0
      %697 = vmatpush1.bf16.msra.mxu0 0
      %698 = vmatprep.subr.bf16.mxu0 0
      %699 = vmatpush1.bf16.msra.mxu0 0
      %700 = vmatprep.subr.bf16.mxu0 0
      %701 = vmatpush1.bf16.msra.mxu0 0
      %702 = vmatprep.subr.bf16.mxu0 0
      %703 = vmatpush1.bf16.msra.mxu0 0
      %704 = vmatprep.subr.bf16.mxu0 0
      %705 = vmatpush1.bf16.msra.mxu0 0
      %706 = vmatprep.subr.bf16.mxu0 0
      %707 = vmatpush1.bf16.msra.mxu0 0
      %708 = vmatprep.subr.bf16.mxu0 0
      %709 = vmatpush1.bf16.msra.mxu0 0
      %710 = vmatprep.subr.bf16.mxu0 0
      %711 = vmatpush1.bf16.msra.mxu0 0
      %712 = vmatprep.subr.bf16.mxu0 0
      %713 = vmatpush1.bf16.msra.mxu0 0
      %714 = vmatprep.mubr.bf16.mxu0 0
      %715 = vmatmul.mubr.bf16.gmra.mrb[0].mxu0 %v680
      %v716 = vpop.f32.mrb[0].mxu0
      %v717 = vadd.f32 0.0, %v716
      %v718 = vpop.f32.mrb[0].mxu0
      %v719 = vpop.f32.mrb[0].mxu0
      %v720 = vpop.f32.mrb[0].mxu0
      %721 = vdwg.mxu0
      %v722 = vadd.f32 %v674, %v717
      %v723 = vxor.u32 %v722, 2147483648
      %v724 = vmul.f32 %v723, 1.442695
      %v725 = vpow.pop %v724
      %v726 = vadd.f32 %v725, 1.0
      %v727 = vrcp.pop %v726
      %v728 = vmul.f32 1.0, %v727
      %v729 = vtanh.pop %v722
      %v730 = vmul.f32 %v728, %v658
      %732 = vrot.lane.b32.xlu0 %v729, 64
      %v733 = vpop.permute.xlu0 %732
      %v735 = vmul.f32 %v728, %v733
      %737 = vrot.lane.b32.xlu0 %v735, 32
      %v738 = vpop.permute.xlu0 %737
      %v740 = vadd.f32 %v730, %v738
      %v741 = vtanh.pop %v740
      %743 = vrot.lane.b32.xlu0 %v741, 64
      %v744 = vpop.permute.xlu0 %743
      %v746 = vmul.f32 %v728, %v744
      %748 = vrot.lane.b32.xlu0 %v746, 32
      %v749 = vpop.permute.xlu0 %748
      %s751 = scalar_lea.vmem %s163, %s672
      %752 = vst.msk [vmem:[%s751] sm:$0xff] %vm186, %v749
      %s753 = scalar_select %p169, 7, 0
      %s754 = smul.u32 %s753, 8
      %s755 = scalar_lea.vmem %s153, %s754
      %v756 = vld [vmem:[%s755] sm:$0xff]
      %v757 = vpack.c.bf16 %v746, %v746
      %759 = vrot.lane.b32.xlu0 %v757, 32
      %v760 = vpop.permute.xlu0 %759
      %v762 = vsel %vm186, %v760, 0
      %764 = vmatprep.subr.bf16.mxu0 0
      %765 = vmatpush1.bf16.msra.mxu0 %v182
      %766 = vmatprep.subr.bf16.mxu0 0
      %767 = vmatpush1.bf16.msra.mxu0 %v183
      %768 = vmatprep.subr.bf16.mxu0 0
      %769 = vmatpush1.bf16.msra.mxu0 0
      %770 = vmatprep.subr.bf16.mxu0 0
      %771 = vmatpush1.bf16.msra.mxu0 0
      %772 = vmatprep.subr.bf16.mxu0 0
      %773 = vmatpush1.bf16.msra.mxu0 0
      %774 = vmatprep.subr.bf16.mxu0 0
      %775 = vmatpush1.bf16.msra.mxu0 0
      %776 = vmatprep.subr.bf16.mxu0 0
      %777 = vmatpush1.bf16.msra.mxu0 0
      %778 = vmatprep.subr.bf16.mxu0 0
      %779 = vmatpush1.bf16.msra.mxu0 0
      %780 = vmatprep.subr.bf16.mxu0 0
      %781 = vmatpush1.bf16.msra.mxu0 0
      %782 = vmatprep.subr.bf16.mxu0 0
      %783 = vmatpush1.bf16.msra.mxu0 0
      %784 = vmatprep.subr.bf16.mxu0 0
      %785 = vmatpush1.bf16.msra.mxu0 0
      %786 = vmatprep.subr.bf16.mxu0 0
      %787 = vmatpush1.bf16.msra.mxu0 0
      %788 = vmatprep.subr.bf16.mxu0 0
      %789 = vmatpush1.bf16.msra.mxu0 0
      %790 = vmatprep.subr.bf16.mxu0 0
      %791 = vmatpush1.bf16.msra.mxu0 0
      %792 = vmatprep.subr.bf16.mxu0 0
      %793 = vmatpush1.bf16.msra.mxu0 0
      %794 = vmatprep.subr.bf16.mxu0 0
      %795 = vmatpush1.bf16.msra.mxu0 0
      %796 = vmatprep.mubr.bf16.mxu0 0
      %797 = vmatmul.mubr.bf16.gmra.mrb[0].mxu0 %v762
      %v798 = vpop.f32.mrb[0].mxu0
      %v799 = vadd.f32 0.0, %v798
      %v800 = vpop.f32.mrb[0].mxu0
      %v801 = vpop.f32.mrb[0].mxu0
      %v802 = vpop.f32.mrb[0].mxu0
      %803 = vdwg.mxu0
      %v804 = vadd.f32 %v756, %v799
      %v805 = vxor.u32 %v804, 2147483648
      %v806 = vmul.f32 %v805, 1.442695
      %v807 = vpow.pop %v806
      %v808 = vadd.f32 %v807, 1.0
      %v809 = vrcp.pop %v808
      %v810 = vmul.f32 1.0, %v809
      %v811 = vtanh.pop %v804
      %v812 = vmul.f32 %v810, %v740
      %814 = vrot.lane.b32.xlu0 %v811, 64
      %v815 = vpop.permute.xlu0 %814
      %v817 = vmul.f32 %v810, %v815
      %819 = vrot.lane.b32.xlu0 %v817, 32
      %v820 = vpop.permute.xlu0 %819
      %v822 = vadd.f32 %v812, %v820
      %v823 = vtanh.pop %v822
      %825 = vrot.lane.b32.xlu0 %v823, 64
      %v826 = vpop.permute.xlu0 %825
      %v828 = vmul.f32 %v810, %v826
      %830 = vrot.lane.b32.xlu0 %v828, 32
      %v831 = vpop.permute.xlu0 %830
      %s833 = scalar_lea.vmem %s163, %s754
      %834 = vst.msk [vmem:[%s833] sm:$0xff] %vm186, %v831
      %p835 = scmp.lt.s32.totalorder %s13, 1
      %s836 = scalar_select %p835, %s13, 1
      %s837 = smul.addr %s836, 8
      %s838 = smul.addr %s837, 8
      %s839 = scalar_lea.vmem %s2, %s838
      // Predicated region
      $region29: #{lstm_classifier_forward.6} parent=27 // pred_check
        %p840 = pneg %p83
      $region30: #{lstm_classifier_forward.6} parent=27 // pred_check_branch
        %842 = sbr.rel (%p840) target = $region32
      $region31: #{lstm_classifier_forward.6} parent=27 // pred_region
        _
      $region32: #{lstm_classifier_forward.6} parent=27 // pred_fallthru
        _
    $region28: #{lstm_classifier_forward.6} parent=5 // pred_fallthru
      _
    %p843 = scmp.le.s32.totalorder 2, %s8
    // Predicated region
    $region33: #{lstm_classifier_forward.6} parent=5 // pred_check
      %p844 = pneg %p843
    $region34: #{lstm_classifier_forward.6} parent=5 // pred_check_branch
      %846 = sbr.rel (%p844) target = $region36
    $region35: #{lstm_classifier_forward.6} parent=5 // pred_region
      %s847 = ssub.s32 %s8, 2
      // Predicated region
      $region37: #{lstm_classifier_forward.6} parent=35 // pred_check
        %p848 = pneg %p89
      $region38: #{lstm_classifier_forward.6} parent=35 // pred_check_branch
        %850 = sbr.rel (%p848) target = $region40
      $region39: #{lstm_classifier_forward.6} parent=35 // pred_region
        %p851 = scmp.lt.s32.totalorder %s14, 1
        %s852 = scalar_select %p851, %s14, 1
        %s853 = smul.addr %s852, 8
        %s854 = smul.addr %s853, 8
        %s855 = scalar_lea.vmem %s2, %s854
      $region40: #{lstm_classifier_forward.6} parent=35 // pred_fallthru
        _
    $region36: #{lstm_classifier_forward.6} parent=5 // pred_fallthru
      _
  $region6: #{lstm_classifier_forward.6} parent=0 // loop_footer
    %s12 = sadd.s32 1, %s8
  $region7: #{lstm_classifier_forward.6} parent=0 // loop_footer_branch
    %7 = sbr.rel target = $region3
  $region8: #{lstm_classifier_forward.6} parent=0 // loop_exit
    _

</llo_original>
